<compile_context>
chip_gen: v6e
topology: v6e:2x2x1
jax: 0.10.0
libtpu: 0.0.40
codegen_flags: <defaults>
</compile_context>

<pallas_src>
import functools
import math

import jax
import jax.numpy as jnp
from jax.experimental import pallas as pl
from jax.experimental.pallas import tpu as pltpu

_EPS = 1e-5


def _rmsnorm_f32(x_f32, w_f32):
    var = jnp.mean(x_f32 * x_f32, axis=-1, keepdims=True)
    return x_f32 * jax.lax.rsqrt(var + _EPS) * w_f32


def _const_weight_spec(block_shape, index_map, single_buffer):
    """BlockSpec for a grid-invariant weight; single-buffered when supported."""
    if single_buffer:
        try:
            return pl.BlockSpec(block_shape, index_map,
                                pipeline_mode=pl.Buffered(1))
        except (TypeError, ValueError, AttributeError):
            pass
    return pl.BlockSpec(block_shape, index_map)


def _vmem_capacity_bytes():
    try:
        return int(pltpu.get_tpu_info().vmem_capacity_bytes)
    except Exception:
        return 128 << 20   # v5e/v6e-like default


def _default_vmem_limit_bytes():
    cap = _vmem_capacity_bytes()
    return max(32 << 20, min(cap * 3 // 4, 100 << 20))


def _pick_tile(total, target, align):
    """Largest multiple of `align` that divides `total` and is <= target."""
    if total <= target:
        return total
    t = (target // align) * align
    while t >= align:
        if total % t == 0:
            return t
        t -= align
    return total


def _pick_head_group(num_heads, head_dim):
    """Smallest divisor G of num_heads with G*head_dim a multiple of 128."""
    for g in range(1, num_heads + 1):
        if num_heads % g == 0 and (g * head_dim) % 128 == 0:
            return g
    return num_heads          # fall back to all heads (block == full H)


# --------------- kernel 1: attention_norm + fused QKV projection ------------
def _qkv_kernel(x_ref, nw_ref, wqkv_ref, q_ref, k_ref, v_ref, *, scale):
    f32 = jnp.float32
    H = x_ref.shape[-1]
    x = x_ref[...].astype(f32)
    h = _rmsnorm_f32(x, nw_ref[...].astype(f32)).astype(wqkv_ref.dtype)
    qkv = jnp.dot(h, wqkv_ref[...], preferred_element_type=f32)   # (tile, 3H)
    q_ref[...] = (qkv[:, :H] * scale).astype(q_ref.dtype)   # fold 1/sqrt(hd)
    k_ref[...] = qkv[:, H:2 * H].astype(k_ref.dtype)
    v_ref[...] = qkv[:, 2 * H:].astype(v_ref.dtype)


# --------------- kernel 2: flash attention (FULL mask, head-grouped) --------
def _flash_attn_kernel(q_ref, k_ref, v_ref, o_ref, m_sc, l_sc, acc_sc,
                       *, heads_per_group, head_dim):
    f32 = jnp.float32
    kv = pl.program_id(2)

    @pl.when(kv == 0)
    def _():
        m_sc[...] = jnp.full(m_sc.shape, -jnp.inf, dtype=f32)
        l_sc[...] = jnp.zeros(l_sc.shape, dtype=f32)
        acc_sc[...] = jnp.zeros(acc_sc.shape, dtype=f32)

    q = q_ref[...]   # (TQ,  G*hd), scale already folded into q
    k = k_ref[...]   # (TKV, G*hd)
    v = v_ref[...]   # (TKV, G*hd)

    for g in range(heads_per_group):          # unrolled; G==2 at prod shapes
        sl = slice(g * head_dim, (g + 1) * head_dim)
        # QK^T contracting the last dims directly (no materialized transpose).
        s = jax.lax.dot_general(q[:, sl], k[:, sl],
                                dimension_numbers=(((1,), (1,)), ((), ())),
                                preferred_element_type=f32)       # (TQ, TKV)
        m_prev = m_sc[g]
        m_new = jnp.maximum(m_prev, jnp.max(s, axis=-1, keepdims=True))
        alpha = jnp.exp(m_prev - m_new)
        p = jnp.exp(s - m_new)
        l_sc[g] = alpha * l_sc[g] + jnp.sum(p, axis=-1, keepdims=True)
        acc_sc[g] = alpha * acc_sc[g] + jnp.dot(
            p.astype(v.dtype), v[:, sl], preferred_element_type=f32)
        m_sc[g] = m_new

    @pl.when(kv == pl.num_programs(2) - 1)
    def _():
        for g in range(heads_per_group):
            inv = pl.reciprocal(l_sc[g], approx=True)   # EUP slot, ~free
            o_ref[:, g * head_dim:(g + 1) * head_dim] = (
                acc_sc[g] * inv).astype(o_ref.dtype)


# ------ kernel 3: Wo proj + residual + ffn_norm + GatedMLP (I-tiled) --------
def _out_mlp_kernel(attn_ref, x_ref, wo_ref, nw_ref, wg_ref, wu_ref, wd_ref,
                    o_ref, x1_sc, h2_sc, acc_sc):
    f32 = jnp.float32
    j = pl.program_id(1)

    @pl.when(j == 0)
    def _():
        a = attn_ref[...].astype(wo_ref.dtype)
        x1 = x_ref[...].astype(f32) + jnp.dot(a, wo_ref[...],
                                              preferred_element_type=f32)
        x1_sc[...] = x1                                       # keep f32
        h2_sc[...] = _rmsnorm_f32(x1, nw_ref[...].astype(f32)).astype(h2_sc.dtype)
        acc_sc[...] = jnp.zeros(acc_sc.shape, dtype=f32)

    h2 = h2_sc[...]                                           # weight dtype
    g = jnp.dot(h2, wg_ref[...], preferred_element_type=f32)
    u = jnp.dot(h2, wu_ref[...], preferred_element_type=f32)
    gu = (jax.nn.silu(g) * u).astype(wd_ref.dtype)
    acc_sc[...] += jnp.dot(gu, wd_ref[...], preferred_element_type=f32)

    @pl.when(j == pl.num_programs(1) - 1)
    def _():
        o_ref[...] = (x1_sc[...] + acc_sc[...]).astype(o_ref.dtype)


def pixtral_attention_layer(hidden_states, params, *, num_heads,
                            tile_q=None, tile_kv=None, tile_i=None,
                            vmem_limit_bytes=None, single_buffer_weights=True):
    """hidden_states: (S, H) packed patch tokens. Linear weights are [in, out]."""
    S, H = hidden_states.shape
    assert H % num_heads == 0
    hd = H // num_heads
    I = params["w_gate"].shape[1]
    dtype = hidden_states.dtype
    wdtype = params["w_gate"].dtype

    vmem_cap = _vmem_capacity_bytes()
    if vmem_limit_bytes is None:
        vmem_limit_bytes = _default_vmem_limit_bytes()

    # Generation-aware tile defaults (never the full S / I extents).
    if tile_q is None:
        tile_q = _pick_tile(S, 256, 8)
    if tile_kv is None:
        tile_kv = _pick_tile(S, 512, 8)
    if tile_i is None:
        tile_i = _pick_tile(I, 512 if vmem_cap <= (64 << 20) else 1024, 128)

    assert S % tile_q == 0 and (tile_q % 8 == 0 or tile_q == S)
    assert S % tile_kv == 0 and (tile_kv % 8 == 0 or tile_kv == S)
    assert I % tile_i == 0 and (tile_i % 128 == 0 or tile_i == I)

    # Head grouping so attention blocks are lane-dense (last dim 128, or H).
    G = _pick_head_group(num_heads, hd)
    num_groups = num_heads // G
    gw = G * hd                                 # lane width of one group block

    attn_nw = params["attn_norm_w"].reshape(1, H)
    ffn_nw = params["ffn_norm_w"].reshape(1, H)
    wqkv = jnp.concatenate([params["wq"], params["wk"], params["wv"]], axis=1)

    def cparams(sem):
        return pltpu.CompilerParams(dimension_semantics=sem,
                                    vmem_limit_bytes=vmem_limit_bytes)

    # ---- 1) attention_norm + fused QKV projection (K/V computed once) ----
    q, k, v = pl.pallas_call(
        functools.partial(_qkv_kernel, scale=1.0 / math.sqrt(hd)),
        out_shape=(jax.ShapeDtypeStruct((S, H), dtype),) * 3,
        grid=(S // tile_q,),
        in_specs=[
            pl.BlockSpec((tile_q, H), lambda i: (i, 0)),                       # x
            _const_weight_spec((1, H), lambda i: (0, 0), single_buffer_weights),
            _const_weight_spec((H, 3 * H), lambda i: (0, 0), single_buffer_weights),
        ],
        out_specs=(pl.BlockSpec((tile_q, H), lambda i: (i, 0)),) * 3,
        compiler_params=cparams(("parallel",)),
    )(hidden_states, attn_nw, wqkv)

    # ---- 2) flash attention over (head_groups, q_tiles, kv_tiles) ----
    #     Q/K/V/O blocks are column slices of the (S, H) layout: no transposes.
    attn_out = pl.pallas_call(
        functools.partial(_flash_attn_kernel, heads_per_group=G, head_dim=hd),
        out_shape=jax.ShapeDtypeStruct((S, H), dtype),
        grid=(num_groups, S // tile_q, S // tile_kv),
        in_specs=[
            pl.BlockSpec((tile_q, gw), lambda g, i, j: (i, g)),
            pl.BlockSpec((tile_kv, gw), lambda g, i, j: (j, g)),
            pl.BlockSpec((tile_kv, gw), lambda g, i, j: (j, g)),
        ],
        out_specs=pl.BlockSpec((tile_q, gw), lambda g, i, j: (i, g)),
        scratch_shapes=[
            pltpu.VMEM((G, tile_q, 1), jnp.float32),    # m (per head)
            pltpu.VMEM((G, tile_q, 1), jnp.float32),    # l (per head)
            pltpu.VMEM((G, tile_q, hd), jnp.float32),   # acc (per head)
        ],
        compiler_params=cparams(("parallel", "parallel", "arbitrary")),
    )(q, k, v)

    # ---- 3) Wo + residual + ffn_norm + GatedMLP, intermediate dim tiled ----
    out = pl.pallas_call(
        _out_mlp_kernel,
        out_shape=jax.ShapeDtypeStruct((S, H), dtype),
        grid=(S // tile_q, I // tile_i),
        in_specs=[
            pl.BlockSpec((tile_q, H), lambda i, j: (i, 0)),                    # attn
            pl.BlockSpec((tile_q, H), lambda i, j: (i, 0)),                    # residual x
            _const_weight_spec((H, H), lambda i, j: (0, 0), single_buffer_weights),   # Wo
            _const_weight_spec((1, H), lambda i, j: (0, 0), single_buffer_weights),   # ffn_norm w
            pl.BlockSpec((H, tile_i), lambda i, j: (0, j)),                    # W gate
            pl.BlockSpec((H, tile_i), lambda i, j: (0, j)),                    # W up
            pl.BlockSpec((tile_i, H), lambda i, j: (j, 0)),                    # W down
        ],
        out_specs=pl.BlockSpec((tile_q, H), lambda i, j: (i, 0)),
        scratch_shapes=[
            pltpu.VMEM((tile_q, H), jnp.float32),   # x1 (post-attn residual), f32
            pltpu.VMEM((tile_q, H), wdtype),        # h2 (ffn_norm out), weight dtype
            pltpu.VMEM((tile_q, H), jnp.float32),   # MLP accumulator, f32
        ],
        compiler_params=cparams(("parallel", "arbitrary")),
    )(attn_out, hidden_states, params["wo"], ffn_nw,
      params["w_gate"], params["w_up"], params["w_down"])

    return out


def _reference(x, params, *, num_heads):
    """Pure-JAX reference of the same forward pass."""
    f32 = jnp.float32
    S, H = x.shape
    hd = H // num_heads
    x = x.astype(f32)

    def rms(v, w):
        return v * jax.lax.rsqrt(jnp.mean(v * v, -1, keepdims=True) + _EPS) * w

    h = rms(x, params["attn_norm_w"].astype(f32))
    q = h @ params["wq"].astype(f32)
    k = h @ params["wk"].astype(f32)
    v = h @ params["wv"].astype(f32)
    q = q.reshape(S, num_heads, hd).transpose(1, 0, 2)
    k = k.reshape(S, num_heads, hd).transpose(1, 0, 2)
    v = v.reshape(S, num_heads, hd).transpose(1, 0, 2)
    s = jnp.einsum("hqd,hkd->hqk", q, k) / math.sqrt(hd)
    p = jax.nn.softmax(s, axis=-1)
    o = jnp.einsum("hqk,hkd->hqd", p, v).transpose(1, 0, 2).reshape(S, H)
    x1 = x + o @ params["wo"].astype(f32)
    h2 = rms(x1, params["ffn_norm_w"].astype(f32))
    ff = (jax.nn.silu(h2 @ params["w_gate"].astype(f32)) *
          (h2 @ params["w_up"].astype(f32))) @ params["w_down"].astype(f32)
    return x1 + ff


if __name__ == "__main__":
    # Small PixtralVisionConfig-like shapes (lane-aligned so the head-group
    # blocks are dense, mirroring the prod hd=64 / G=2 structure).
    S = 64            # packed patch tokens
    H = 128           # hidden_size
    NUM_HEADS = 4     # num_attention_heads (head_dim = 32 -> one group of 4)
    I = 256           # intermediate_size (2 I-tiles of 128)
    DTYPE = jnp.float32

    key = jax.random.PRNGKey(0)
    ks = jax.random.split(key, 8)
    wscale = 0.02
    params = {
        # Linear weights stored [in, out] (pre-transposed vs torch [out, in]).
        "wq": (wscale * jax.random.normal(ks[0], (H, H))).astype(DTYPE),
        "wk": (wscale * jax.random.normal(ks[1], (H, H))).astype(DTYPE),
        "wv": (wscale * jax.random.normal(ks[2], (H, H))).astype(DTYPE),
        "wo": (wscale * jax.random.normal(ks[3], (H, H))).astype(DTYPE),
        "w_gate": (wscale * jax.random.normal(ks[4], (H, I))).astype(DTYPE),
        "w_up": (wscale * jax.random.normal(ks[5], (H, I))).astype(DTYPE),
        "w_down": (wscale * jax.random.normal(ks[6], (I, H))).astype(DTYPE),
        # RMSNorm weights initialize to ones in the torch module.
        "attn_norm_w": jnp.ones((H,), DTYPE),
        "ffn_norm_w": jnp.ones((H,), DTYPE),
    }

    hidden_states = jax.random.normal(ks[7], (S, H)).astype(DTYPE)
    # position_ids exist in the torch signature but are unused (no RoPE).
    position_ids = jnp.arange(S, dtype=jnp.int32)  # noqa: F841

    run = functools.partial(pixtral_attention_layer, hidden_states, params,
                            num_heads=NUM_HEADS, tile_q=32, tile_kv=32,
                            tile_i=128)
    try:
        out = jax.block_until_ready(run())
    except Exception:
        # Fallback: if this JAX build rejects single-buffered weight specs
        # (pl.Buffered(1)) at lowering time, retry with default buffering.
        out = jax.block_until_ready(run(single_buffer_weights=False))

    ref = _reference(hidden_states, params, num_heads=NUM_HEADS)
    assert out.shape == (S, H)
    max_err = float(jnp.max(jnp.abs(out - ref)))
    # Tolerance accounts for the approximate EUP reciprocal in the softmax
    # normalization and MXU pass ordering; still catches any semantic bug.
    assert jnp.allclose(out, ref, atol=2e-3, rtol=2e-3), max_err
    print("KERNEL_OK")
</pallas_src>

<mosaic_0001>
module attributes {stable_mosaic.version = 11 : i64} {
  func.func @_qkv_kernel(%arg0: i32, %arg1: memref<32x128xf32, #tpu.memory_space<vmem>>, %arg2: memref<1x128xf32, #tpu.memory_space<vmem>>, %arg3: memref<128x384xf32, #tpu.memory_space<vmem>>, %arg4: memref<32x128xf32, #tpu.memory_space<vmem>>, %arg5: memref<32x128xf32, #tpu.memory_space<vmem>>, %arg6: memref<32x128xf32, #tpu.memory_space<vmem>>) attributes {dimension_semantics = [#tpu.dimension_semantics<parallel>], iteration_bounds = array<i64: 2>, scalar_prefetch = 0 : i64, scratch_operands = 0 : i64, tpu.core_type = #tpu.core_type<tc>, window_params = [{transform_indices = @transform_0, window_bounds = array<i64: 32, 128>}, {pipeline_mode = #tpu.pipeline_mode<synchronous>, transform_indices = @transform_1, window_bounds = array<i64: 1, 128>}, {pipeline_mode = #tpu.pipeline_mode<synchronous>, transform_indices = @transform_2, window_bounds = array<i64: 128, 384>}, {transform_indices = @transform_3, window_bounds = array<i64: 32, 128>}, {transform_indices = @transform_4, window_bounds = array<i64: 32, 128>}, {transform_indices = @transform_5, window_bounds = array<i64: 32, 128>}]} {
    %c0 = arith.constant 0 : index
    %c0_0 = arith.constant 0 : index
    %0 = vector.load %arg1[%c0, %c0_0] : memref<32x128xf32, #tpu.memory_space<vmem>>, vector<32x128xf32>
    %c0_1 = arith.constant 0 : index
    %c0_2 = arith.constant 0 : index
    %1 = vector.load %arg2[%c0_1, %c0_2] : memref<1x128xf32, #tpu.memory_space<vmem>>, vector<1x128xf32>
    %2 = arith.mulf %0, %0 : vector<32x128xf32>
    %cst = arith.constant dense<0.000000e+00> : vector<32xf32>
    %3 = vector.multi_reduction <add>, %2, %cst [1] : vector<32x128xf32> to vector<32xf32>
    %4 = vector.shape_cast %3 : vector<32xf32> to vector<32x1xf32>
    %cst_3 = arith.constant 1.280000e+02 : f32
    %5 = vector.broadcast %cst_3 : f32 to vector<32x1xf32>
    %6 = arith.divf %4, %5 : vector<32x1xf32>
    %cst_4 = arith.constant 9.99999974E-6 : f32
    %7 = vector.broadcast %cst_4 : f32 to vector<32x1xf32>
    %8 = arith.addf %6, %7 : vector<32x1xf32>
    %9 = math.rsqrt %8 : vector<32x1xf32>
    %10 = vector.broadcast %9 : vector<32x1xf32> to vector<32x128xf32>
    %11 = arith.mulf %0, %10 : vector<32x128xf32>
    %12 = vector.broadcast %1 : vector<1x128xf32> to vector<32x128xf32>
    %13 = arith.mulf %11, %12 : vector<32x128xf32>
    %c0_5 = arith.constant 0 : index
    %c0_6 = arith.constant 0 : index
    %14 = vector.load %arg3[%c0_5, %c0_6] : memref<128x384xf32, #tpu.memory_space<vmem>>, vector<128x384xf32>
    %cst_7 = arith.constant dense<0.000000e+00> : vector<32x384xf32>
    %15 = tpu.matmul %13, %14, %cst_7 {dimension_numbers = #tpu.dot_dimension_numbers<[1], [0], [0], [1], [0, 0, 1, 1], [], []>} : vector<32x128xf32>, vector<128x384xf32>, vector<32x384xf32> -> vector<32x384xf32>
    %16 = vector.extract_strided_slice %15 {offsets = [0, 0], sizes = [32, 128], strides = [1, 1]} : vector<32x384xf32> to vector<32x128xf32>
    %cst_8 = arith.constant 0.176776692 : f32
    %17 = vector.broadcast %cst_8 : f32 to vector<32x128xf32>
    %18 = arith.mulf %16, %17 : vector<32x128xf32>
    %c0_9 = arith.constant 0 : index
    %c0_10 = arith.constant 0 : index
    %19 = vector.load %arg4[%c0_9, %c0_10] : memref<32x128xf32, #tpu.memory_space<vmem>>, vector<32x128xf32>
    tpu.vector_store %arg4[%c0_9, %c0_10], %18 {strides = array<i32>} : memref<32x128xf32, #tpu.memory_space<vmem>>, vector<32x128xf32>,
    %20 = vector.extract_strided_slice %15 {offsets = [0, 128], sizes = [32, 128], strides = [1, 1]} : vector<32x384xf32> to vector<32x128xf32>
    %c0_11 = arith.constant 0 : index
    %c0_12 = arith.constant 0 : index
    %21 = vector.load %arg5[%c0_11, %c0_12] : memref<32x128xf32, #tpu.memory_space<vmem>>, vector<32x128xf32>
    tpu.vector_store %arg5[%c0_11, %c0_12], %20 {strides = array<i32>} : memref<32x128xf32, #tpu.memory_space<vmem>>, vector<32x128xf32>,
    %22 = vector.extract_strided_slice %15 {offsets = [0, 256], sizes = [32, 128], strides = [1, 1]} : vector<32x384xf32> to vector<32x128xf32>
    %c0_13 = arith.constant 0 : index
    %c0_14 = arith.constant 0 : index
    %23 = vector.load %arg6[%c0_13, %c0_14] : memref<32x128xf32, #tpu.memory_space<vmem>>, vector<32x128xf32>
    tpu.vector_store %arg6[%c0_13, %c0_14], %22 {strides = array<i32>} : memref<32x128xf32, #tpu.memory_space<vmem>>, vector<32x128xf32>,
    return
  }
  func.func @transform_0(%arg0: i32) -> (i32, i32) {
    %c0_i32 = arith.constant 0 : i32
    %c0_i32_0 = arith.constant 0 : i32
    return %arg0, %c0_i32 : i32, i32
  }
  func.func @transform_1(%arg0: i32) -> (i32, i32) {
    %c0_i32 = arith.constant 0 : i32
    %c0_i32_0 = arith.constant 0 : i32
    %c0_i32_1 = arith.constant 0 : i32
    return %c0_i32, %c0_i32_0 : i32, i32
  }
  func.func @transform_2(%arg0: i32) -> (i32, i32) {
    %c0_i32 = arith.constant 0 : i32
    %c0_i32_0 = arith.constant 0 : i32
    %c0_i32_1 = arith.constant 0 : i32
    return %c0_i32, %c0_i32_0 : i32, i32
  }
  func.func @transform_3(%arg0: i32) -> (i32, i32) {
    %c0_i32 = arith.constant 0 : i32
    %c0_i32_0 = arith.constant 0 : i32
    return %arg0, %c0_i32 : i32, i32
  }
  func.func @transform_4(%arg0: i32) -> (i32, i32) {
    %c0_i32 = arith.constant 0 : i32
    %c0_i32_0 = arith.constant 0 : i32
    return %arg0, %c0_i32 : i32, i32
  }
  func.func @transform_5(%arg0: i32) -> (i32, i32) {
    %c0_i32 = arith.constant 0 : i32
    %c0_i32_0 = arith.constant 0 : i32
    return %arg0, %c0_i32 : i32, i32
  }
}

module attributes {stable_mosaic.version = 11 : i64} {
  func.func @_qkv_kernel(%arg0: i32, %arg1: memref<32x128xf32, #tpu.memory_space<vmem>>, %arg2: memref<1x128xf32, #tpu.memory_space<vmem>>, %arg3: memref<128x384xf32, #tpu.memory_space<vmem>>, %arg4: memref<32x128xf32, #tpu.memory_space<vmem>>, %arg5: memref<32x128xf32, #tpu.memory_space<vmem>>, %arg6: memref<32x128xf32, #tpu.memory_space<vmem>>) attributes {dimension_semantics = [#tpu.dimension_semantics<parallel>], iteration_bounds = array<i64: 2>, scalar_prefetch = 0 : i64, scratch_operands = 0 : i64, tpu.core_type = #tpu.core_type<tc>, window_params = [{transform_indices = @transform_0, window_bounds = array<i64: 32, 128>}, {pipeline_mode = #tpu.pipeline_mode<synchronous>, transform_indices = @transform_1, window_bounds = array<i64: 1, 128>}, {pipeline_mode = #tpu.pipeline_mode<synchronous>, transform_indices = @transform_2, window_bounds = array<i64: 128, 384>}, {transform_indices = @transform_3, window_bounds = array<i64: 32, 128>}, {transform_indices = @transform_4, window_bounds = array<i64: 32, 128>}, {transform_indices = @transform_5, window_bounds = array<i64: 32, 128>}]} {
    %c0 = arith.constant 0 : index
    %c0_0 = arith.constant 0 : index
    %0 = vector.load %arg1[%c0, %c0_0] : memref<32x128xf32, #tpu.memory_space<vmem>>, vector<32x128xf32>
    %c0_1 = arith.constant 0 : index
    %c0_2 = arith.constant 0 : index
    %1 = vector.load %arg2[%c0_1, %c0_2] : memref<1x128xf32, #tpu.memory_space<vmem>>, vector<1x128xf32>
    %2 = arith.mulf %0, %0 : vector<32x128xf32>
    %cst = arith.constant dense<0.000000e+00> : vector<32xf32>
    %3 = vector.multi_reduction <add>, %2, %cst [1] : vector<32x128xf32> to vector<32xf32>
    %4 = vector.shape_cast %3 : vector<32xf32> to vector<32x1xf32>
    %cst_3 = arith.constant 1.280000e+02 : f32
    %5 = vector.broadcast %cst_3 : f32 to vector<32x1xf32>
    %6 = arith.divf %4, %5 : vector<32x1xf32>
    %cst_4 = arith.constant 9.99999974E-6 : f32
    %7 = vector.broadcast %cst_4 : f32 to vector<32x1xf32>
    %8 = arith.addf %6, %7 : vector<32x1xf32>
    %9 = math.rsqrt %8 : vector<32x1xf32>
    %10 = vector.broadcast %9 : vector<32x1xf32> to vector<32x128xf32>
    %11 = arith.mulf %0, %10 : vector<32x128xf32>
    %12 = vector.broadcast %1 : vector<1x128xf32> to vector<32x128xf32>
    %13 = arith.mulf %11, %12 : vector<32x128xf32>
    %c0_5 = arith.constant 0 : index
    %c0_6 = arith.constant 0 : index
    %14 = vector.load %arg3[%c0_5, %c0_6] : memref<128x384xf32, #tpu.memory_space<vmem>>, vector<128x384xf32>
    %cst_7 = arith.constant dense<0.000000e+00> : vector<32x384xf32>
    %15 = tpu.matmul %13, %14, %cst_7 {dimension_numbers = #tpu.dot_dimension_numbers<[1], [0], [0], [1], [0, 0, 1, 1], [], []>} : vector<32x128xf32>, vector<128x384xf32>, vector<32x384xf32> -> vector<32x384xf32>
    %16 = vector.extract_strided_slice %15 {offsets = [0, 0], sizes = [32, 128], strides = [1, 1]} : vector<32x384xf32> to vector<32x128xf32>
    %cst_8 = arith.constant 0.176776692 : f32
    %17 = vector.broadcast %cst_8 : f32 to vector<32x128xf32>
    %18 = arith.mulf %16, %17 : vector<32x128xf32>
    %c0_9 = arith.constant 0 : index
    %c0_10 = arith.constant 0 : index
    %19 = vector.load %arg4[%c0_9, %c0_10] : memref<32x128xf32, #tpu.memory_space<vmem>>, vector<32x128xf32>
    tpu.vector_store %arg4[%c0_9, %c0_10], %18 {strides = array<i32>} : memref<32x128xf32, #tpu.memory_space<vmem>>, vector<32x128xf32>,
    %20 = vector.extract_strided_slice %15 {offsets = [0, 128], sizes = [32, 128], strides = [1, 1]} : vector<32x384xf32> to vector<32x128xf32>
    %c0_11 = arith.constant 0 : index
    %c0_12 = arith.constant 0 : index
    %21 = vector.load %arg5[%c0_11, %c0_12] : memref<32x128xf32, #tpu.memory_space<vmem>>, vector<32x128xf32>
    tpu.vector_store %arg5[%c0_11, %c0_12], %20 {strides = array<i32>} : memref<32x128xf32, #tpu.memory_space<vmem>>, vector<32x128xf32>,
    %22 = vector.extract_strided_slice %15 {offsets = [0, 256], sizes = [32, 128], strides = [1, 1]} : vector<32x384xf32> to vector<32x128xf32>
    %c0_13 = arith.constant 0 : index
    %c0_14 = arith.constant 0 : index
    %23 = vector.load %arg6[%c0_13, %c0_14] : memref<32x128xf32, #tpu.memory_space<vmem>>, vector<32x128xf32>
    tpu.vector_store %arg6[%c0_13, %c0_14], %22 {strides = array<i32>} : memref<32x128xf32, #tpu.memory_space<vmem>>, vector<32x128xf32>,
    return
  }
  func.func @transform_0(%arg0: i32) -> (i32, i32) {
    %c0_i32 = arith.constant 0 : i32
    %c0_i32_0 = arith.constant 0 : i32
    return %arg0, %c0_i32 : i32, i32
  }
  func.func @transform_1(%arg0: i32) -> (i32, i32) {
    %c0_i32 = arith.constant 0 : i32
    %c0_i32_0 = arith.constant 0 : i32
    %c0_i32_1 = arith.constant 0 : i32
    return %c0_i32, %c0_i32_0 : i32, i32
  }
  func.func @transform_2(%arg0: i32) -> (i32, i32) {
    %c0_i32 = arith.constant 0 : i32
    %c0_i32_0 = arith.constant 0 : i32
    %c0_i32_1 = arith.constant 0 : i32
    return %c0_i32, %c0_i32_0 : i32, i32
  }
  func.func @transform_3(%arg0: i32) -> (i32, i32) {
    %c0_i32 = arith.constant 0 : i32
    %c0_i32_0 = arith.constant 0 : i32
    return %arg0, %c0_i32 : i32, i32
  }
  func.func @transform_4(%arg0: i32) -> (i32, i32) {
    %c0_i32 = arith.constant 0 : i32
    %c0_i32_0 = arith.constant 0 : i32
    return %arg0, %c0_i32 : i32, i32
  }
  func.func @transform_5(%arg0: i32) -> (i32, i32) {
    %c0_i32 = arith.constant 0 : i32
    %c0_i32_0 = arith.constant 0 : i32
    return %arg0, %c0_i32 : i32, i32
  }
}

</mosaic_0001>

<llo_original>
// kernel: tpu_custom_call.1
$region0: #{tpu_custom_call.1}
  #allocation0 [shape = 'u32[]', space=smem, size = 0x4, offset = 0x4, fixed_abs, tag = 'smem constant byte address 0x4 - core index']
  #allocation1 [shape = 'u32[144,128]{1,0:T(1,128)}', space=vmem, size = 0x12000, scoped, tag = 'internal scratch']
  %s0 = inlined_call_operand.hbm [shape: f32[64,128], index: 0, kind: input, shape index: {}]
  %s1 = inlined_call_operand.vmem [shape: f32[1,128], index: 1, kind: input, shape index: {}]
  %s2 = inlined_call_operand.hbm [shape: f32[128,384], index: 2, kind: input, shape index: {}]
  %s3 = inlined_call_operand.hbm [shape: f32[64,128], index: 3, kind: output, shape index: {0}]
  %s4 = inlined_call_operand.hbm [shape: f32[64,128], index: 4, kind: output, shape index: {1}]
  %s5 = inlined_call_operand.hbm [shape: f32[64,128], index: 5, kind: output, shape index: {2}]
  %6 = xla_tuple %s3, %s4, %s5
  %s7 = sld [smem:[#allocation0]]
  $region69: #{tpu_custom_call.1} parent=0
    _
  %s9 = ssub.s32 1, %s7
  %s10 = scalar_select 0, %s9, %s7
  $region1: #{tpu_custom_call.1} parent=0
    #allocation2 [shape = 'u8[32768]{0}', space=vmem, size = 0x8000, scoped, tag = 'input window, operand 0']
    #allocation3 [shape = 's32[2]{0}', space=sflag, size = 0x8, scoped, tag = 'scoped memory for tpu_custom_call.1']
    #allocation4 [shape = 's32[2]{0}', space=sflag, size = 0x8, scoped, tag = 'scoped memory for tpu_custom_call.1']
    #allocation5 [shape = 'u8[196608]{0}', space=vmem, size = 0x30000, scoped, tag = 'input window, operand 2, single buffered']
    #allocation6 [shape = 's32[1]{0}', space=sflag, size = 0x4, scoped, tag = 'scoped memory for tpu_custom_call.1']
    #allocation7 [shape = 'u8[32768]{0}', space=vmem, size = 0x8000, scoped, tag = 'output window, operand 0']
    #allocation8 [shape = 'u8[32768]{0}', space=vmem, size = 0x8000, scoped, tag = 'output window, operand 1']
    #allocation9 [shape = 's32[2]{0}', space=sflag, size = 0x8, scoped, tag = 'scoped memory for tpu_custom_call.1']
    #allocation10 [shape = 'u8[32768]{0}', space=vmem, size = 0x8000, scoped, tag = 'output window, operand 2']
    %11 = vsyncpa [#allocation3], 0
    %s12 = scalar_lea.sflag [#allocation3], 1
    %13 = vsyncpa %s12, 0
    %14 = vsyncpa [#allocation6], 0
    %15 = vsyncpa [#allocation4], 0
    %s16 = scalar_lea.sflag [#allocation4], 1
    %17 = vsyncpa %s16, 0
    %18 = vsyncpa [#allocation9], 0
    %s19 = scalar_lea.sflag [#allocation9], 1
    %20 = vsyncpa %s19, 0
    loop: start=0, step=1, limit=4
    $region2: #{tpu_custom_call.1} parent=1 // loop_pre_header
      _
    $region3: #{tpu_custom_call.1} parent=1 // loop_header
      %s22 = sphi 0, %s26
      %p23 = scmp.ge.s32.totalorder %s22, 4
      %s32 = sphi 0, %s34
      %s35 = sphi 0, %s32
      %s36 = sphi 0, %s35
      %s52 = sphi 0, %s36
      %s56 = sphi 0, %s56
      %s58 = sphi 0, %s56
      %s59 = sphi 0, %s58
      %s73 = sphi 0, %s59
      %s77 = sphi 0, %s77
      %s79 = sphi 0, %s77
      %s80 = sphi 0, %s79
      %s94 = sphi 0, %s80
      %s100 = sphi 0, %s102
      %s103 = sphi 0, %s100
      %s104 = sphi 0, %s103
      %s120 = sphi 0, %s104
      %s126 = sphi 0, %s128
      %s129 = sphi 0, %s126
      %s130 = sphi 0, %s129
      %s146 = sphi 0, %s130
      %s152 = sphi 0, %s154
      %s155 = sphi 0, %s152
      %s156 = sphi 0, %s155
      %s172 = sphi 0, %s156
    $region4: #{tpu_custom_call.1} parent=1 // loop_header_branch
      %25 = sbr.rel (%p23) target = $region8
    $region5: #{tpu_custom_call.1} parent=1 // loop_body
      %s27 = ssub.s32 %s22, 1
      %s28 = ssub.s32 %s22, 2
      %s29 = sadd.s32 %s22, 1
      %s30 = ssub.s32 %s22, %s29
      %p31 = scmp.eq.s32.totalorder %s30, 0
      %s33 = sadd.s32 %s32, 1
      %s34 = scalar_select %p31, %s32, %s33
      %p37 = pneg %p31
      %p38 = scmp.eq.s32.totalorder %s22, 1
      %p39 = por %p37, %p38
      %p40 = scmp.ne.s32.totalorder %s32, %s35
      %p41 = scmp.eq.s32.totalorder %s22, 0
      %p42 = por %p40, %p41
      %p43 = scmp.ne.s32.totalorder %s32, %s35
      %p44 = scmp.eq.s32.totalorder %s27, 1
      %p45 = por %p43, %p44
      %p46 = scmp.ne.s32.totalorder %s35, %s36
      %p47 = scmp.eq.s32.totalorder %s27, 0
      %p48 = por %p46, %p47
      %p49 = scmp.ne.s32.totalorder %s35, %s36
      %p50 = scmp.eq.s32.totalorder %s28, 1
      %p51 = por %p49, %p50
      %p53 = scmp.ne.s32.totalorder %s36, %s52
      %p54 = scmp.eq.s32.totalorder %s28, 0
      %p55 = por %p53, %p54
      %s57 = sadd.s32 %s56, 1
      %p60 = scmp.eq.s32.totalorder %s22, 1
      %p61 = scmp.ne.s32.totalorder %s56, %s58
      %p62 = scmp.eq.s32.totalorder %s22, 0
      %p63 = por %p61, %p62
      %p64 = scmp.ne.s32.totalorder %s56, %s58
      %p65 = scmp.eq.s32.totalorder %s27, 1
      %p66 = por %p64, %p65
      %p67 = scmp.ne.s32.totalorder %s58, %s59
      %p68 = scmp.eq.s32.totalorder %s27, 0
      %p69 = por %p67, %p68
      %p70 = scmp.ne.s32.totalorder %s58, %s59
      %p71 = scmp.eq.s32.totalorder %s28, 1
      %p72 = por %p70, %p71
      %p74 = scmp.ne.s32.totalorder %s59, %s73
      %p75 = scmp.eq.s32.totalorder %s28, 0
      %p76 = por %p74, %p75
      %s78 = sadd.s32 %s77, 1
      %p81 = scmp.eq.s32.totalorder %s22, 1
      %p82 = scmp.ne.s32.totalorder %s77, %s79
      %p83 = scmp.eq.s32.totalorder %s22, 0
      %p84 = por %p82, %p83
      %p85 = scmp.ne.s32.totalorder %s77, %s79
      %p86 = scmp.eq.s32.totalorder %s27, 1
      %p87 = por %p85, %p86
      %p88 = scmp.ne.s32.totalorder %s79, %s80
      %p89 = scmp.eq.s32.totalorder %s27, 0
      %p90 = por %p88, %p89
      %p91 = scmp.ne.s32.totalorder %s79, %s80
      %p92 = scmp.eq.s32.totalorder %s28, 1
      %p93 = por %p91, %p92
      %p95 = scmp.ne.s32.totalorder %s80, %s94
      %p96 = scmp.eq.s32.totalorder %s28, 0
      %p97 = por %p95, %p96
      %s98 = ssub.s32 %s22, %s29
      %p99 = scmp.eq.s32.totalorder %s98, 0
      %s101 = sadd.s32 %s100, 1
      %s102 = scalar_select %p99, %s100, %s101
      %p105 = pneg %p99
      %p106 = scmp.eq.s32.totalorder %s22, 1
      %p107 = por %p105, %p106
      %p108 = scmp.ne.s32.totalorder %s100, %s103
      %p109 = scmp.eq.s32.totalorder %s22, 0
      %p110 = por %p108, %p109
      %p111 = scmp.ne.s32.totalorder %s100, %s103
      %p112 = scmp.eq.s32.totalorder %s27, 1
      %p113 = por %p111, %p112
      %p114 = scmp.ne.s32.totalorder %s103, %s104
      %p115 = scmp.eq.s32.totalorder %s27, 0
      %p116 = por %p114, %p115
      %p117 = scmp.ne.s32.totalorder %s103, %s104
      %p118 = scmp.eq.s32.totalorder %s28, 1
      %p119 = por %p117, %p118
      %p121 = scmp.ne.s32.totalorder %s104, %s120
      %p122 = scmp.eq.s32.totalorder %s28, 0
      %p123 = por %p121, %p122
      %s124 = ssub.s32 %s22, %s29
      %p125 = scmp.eq.s32.totalorder %s124, 0
      %s127 = sadd.s32 %s126, 1
      %s128 = scalar_select %p125, %s126, %s127
      %p131 = pneg %p125
      %p132 = scmp.eq.s32.totalorder %s22, 1
      %p133 = por %p131, %p132
      %p134 = scmp.ne.s32.totalorder %s126, %s129
      %p135 = scmp.eq.s32.totalorder %s22, 0
      %p136 = por %p134, %p135
      %p137 = scmp.ne.s32.totalorder %s126, %s129
      %p138 = scmp.eq.s32.totalorder %s27, 1
      %p139 = por %p137, %p138
      %p140 = scmp.ne.s32.totalorder %s129, %s130
      %p141 = scmp.eq.s32.totalorder %s27, 0
      %p142 = por %p140, %p141
      %p143 = scmp.ne.s32.totalorder %s129, %s130
      %p144 = scmp.eq.s32.totalorder %s28, 1
      %p145 = por %p143, %p144
      %p147 = scmp.ne.s32.totalorder %s130, %s146
      %p148 = scmp.eq.s32.totalorder %s28, 0
      %p149 = por %p147, %p148
      %s150 = ssub.s32 %s22, %s29
      %p151 = scmp.eq.s32.totalorder %s150, 0
      %s153 = sadd.s32 %s152, 1
      %s154 = scalar_select %p151, %s152, %s153
      %p157 = pneg %p151
      %p158 = scmp.eq.s32.totalorder %s22, 1
      %p159 = por %p157, %p158
      %p160 = scmp.ne.s32.totalorder %s152, %s155
      %p161 = scmp.eq.s32.totalorder %s22, 0
      %p162 = por %p160, %p161
      %p163 = scmp.ne.s32.totalorder %s152, %s155
      %p164 = scmp.eq.s32.totalorder %s27, 1
      %p165 = por %p163, %p164
      %p166 = scmp.ne.s32.totalorder %s155, %s156
      %p167 = scmp.eq.s32.totalorder %s27, 0
      %p168 = por %p166, %p167
      %p169 = scmp.ne.s32.totalorder %s155, %s156
      %p170 = scmp.eq.s32.totalorder %s28, 1
      %p171 = por %p169, %p170
      %p173 = scmp.ne.s32.totalorder %s156, %s172
      %p174 = scmp.eq.s32.totalorder %s28, 0
      %p175 = por %p173, %p174
      %p176 = scmp.le.s32.totalorder 1, %s22
      %p177 = scmp.lt.s32.totalorder %s22, 3
      %p178 = pnand %p176, %p177
      %p179 = pneg %p178
      // Predicated region
      $region9: #{tpu_custom_call.1} parent=5 // pred_check
        _
      $region10: #{tpu_custom_call.1} parent=5 // pred_check_branch
        %181 = sbr.rel (%p178) target = $region12
      $region11: #{tpu_custom_call.1} parent=5 // pred_region
        %s182 = ssub.s32 %s22, 1
        // Predicated region
        $region13: #{tpu_custom_call.1} parent=11 // pred_check
          %p183 = pneg %p69
        $region14: #{tpu_custom_call.1} parent=11 // pred_check_branch
          %185 = sbr.rel (%p183) target = $region16
        $region15: #{tpu_custom_call.1} parent=11 // pred_region
          _
        $region16: #{tpu_custom_call.1} parent=11 // pred_fallthru
          _
        // Predicated region
        $region17: #{tpu_custom_call.1} parent=11 // pred_check
          %p186 = pneg %p90
        $region18: #{tpu_custom_call.1} parent=11 // pred_check_branch
          %188 = sbr.rel (%p186) target = $region20
        $region19: #{tpu_custom_call.1} parent=11 // pred_region
          %s190 = ssub.s32 6144, 6144
          %191 = vsyncadd [#allocation6], %s190
          %s192 = sshll.u32 [#allocation5], 4
          %s193 = int_to_ptr.vmem [resolvable:$true] %s192
          %198 = dma.hbm_to_vmem [thread:$0]  %s2, 6144, %s193, [#allocation6], 384, 384, 24
        $region20: #{tpu_custom_call.1} parent=11 // pred_fallthru
          _
      $region12: #{tpu_custom_call.1} parent=5 // pred_fallthru
        _
      %p199 = scmp.lt.s32.totalorder %s22, 2
      // Predicated region
      $region21: #{tpu_custom_call.1} parent=5 // pred_check
        %p200 = pneg %p199
      $region22: #{tpu_custom_call.1} parent=5 // pred_check_branch
        %202 = sbr.rel (%p200) target = $region24
      $region23: #{tpu_custom_call.1} parent=5 // pred_region
        // Predicated region
        $region25: #{tpu_custom_call.1} parent=23 // pred_check
          %p203 = pneg %p42
        $region26: #{tpu_custom_call.1} parent=23 // pred_check_branch
          %205 = sbr.rel (%p203) target = $region28
        $region27: #{tpu_custom_call.1} parent=23 // pred_region
          %s206 = sand.u32 %s32, 1
          %s207 = scalar_lea.sflag [#allocation3], %s206
          %s208 = sand.u32 %s32, 1
          %s209 = smul.addr %s208, 32
          %s210 = scalar_lea.vmem [#allocation2], %s209
          %s211 = smul.u32 4, %s22
          %s213 = ssub.s32 512, 512
          %214 = vsyncadd %s207, %s213
          %s215 = smul.addr %s211, 128
          %s216 = scalar_lea.hbm %s0, %s215
          %s217 = sshll.u32 %s210, 4
          %s218 = int_to_ptr.vmem [resolvable:$true] %s217
          %223 = dma.hbm_to_vmem [thread:$0]  %s216, 512, %s218, %s207, 128, 128, 8
        $region28: #{tpu_custom_call.1} parent=23 // pred_fallthru
          _
      $region24: #{tpu_custom_call.1} parent=5 // pred_fallthru
        _
      %p224 = scmp.le.s32.totalorder 1, %s22
      %p225 = scmp.lt.s32.totalorder %s22, 3
      %p226 = pnand %p224, %p225
      %p227 = pneg %p226
      // Predicated region
      $region29: #{tpu_custom_call.1} parent=5 // pred_check
        _
      $region30: #{tpu_custom_call.1} parent=5 // pred_check_branch
        %229 = sbr.rel (%p226) target = $region32
      $region31: #{tpu_custom_call.1} parent=5 // pred_region
        %s230 = ssub.s32 %s22, 1
        %s231 = sand.u32 %s35, 1
        %s232 = scalar_lea.sflag [#allocation3], %s231
        %s233 = sand.u32 %s35, 1
        %s234 = smul.addr %s233, 32
        %s235 = scalar_lea.vmem [#allocation2], %s234
        // Predicated region
        $region33: #{tpu_custom_call.1} parent=31 // pred_check
          %p236 = pneg %p48
        $region34: #{tpu_custom_call.1} parent=31 // pred_check_branch
          %238 = sbr.rel (%p236) target = $region36
        $region35: #{tpu_custom_call.1} parent=31 // pred_region
          %239 = dma.done %s232, 512
        $region36: #{tpu_custom_call.1} parent=31 // pred_fallthru
          _
        // Predicated region
        $region37: #{tpu_custom_call.1} parent=31 // pred_check
          %p240 = pneg %p90
        $region38: #{tpu_custom_call.1} parent=31 // pred_check_branch
          %242 = sbr.rel (%p240) target = $region40
        $region39: #{tpu_custom_call.1} parent=31 // pred_region
          %243 = dma.done [#allocation6], 6144
        $region40: #{tpu_custom_call.1} parent=31 // pred_fallthru
          _
        %s244 = sand.u32 %s35, 1
        %s245 = scalar_lea.sflag [#allocation3], %s244
        %s246 = sand.u32 %s35, 1
        %s247 = smul.addr %s246, 32
        %s248 = scalar_lea.vmem [#allocation2], %s247
        %p249 = pneg %p48
        %p250 = pneg %p45
        %p251 = pneg %p69
        %p252 = pneg %p66
        %p253 = pneg %p90
        %p254 = pneg %p87
        %p255 = pneg %p116
        %p256 = pneg %p113
        %s257 = sand.u32 %s103, 1
        %s258 = scalar_lea.sflag [#allocation4], %s257
        %s259 = sand.u32 %s103, 1
        %s260 = smul.addr %s259, 32
        %s261 = scalar_lea.vmem [#allocation7], %s260
        %p262 = pneg %p142
        %p263 = pneg %p139
        %s264 = sand.u32 %s27, 1
        %s265 = scalar_lea.sflag [#allocation9], %s264
        %s266 = sand.u32 %s129, 1
        %s267 = smul.addr %s266, 32
        %s268 = scalar_lea.vmem [#allocation8], %s267
        %p269 = pneg %p168
        %p270 = pneg %p165
        %s271 = sand.u32 %s27, 1
        %s272 = scalar_lea.sflag [#allocation9], %s271
        %s273 = sand.u32 %s155, 1
        %s274 = smul.addr %s273, 32
        %s275 = scalar_lea.vmem [#allocation10], %s274
        %s276 = smul.u32 4, %s27
        %s277 = smul.u32 4, %s27
        %s278 = smul.u32 4, %s27
        %s279 = smul.u32 4, %s27
        %v280 = vld [vmem:[%s235] sm:$0xff]
        %v281 = vld [vmem:[%s235 + $0x8] sm:$0xff]
        %v282 = vld [vmem:[%s235 + $0x10] sm:$0xff]
        %v283 = vld [vmem:[%s235 + $0x18] sm:$0xff]
        %v284 = vld [vmem:[%s1] sm:$0x1]
        %v285 = vmul.f32 %v280, %v280
        %v286 = vmul.f32 %v281, %v281
        %v287 = vmul.f32 %v282, %v282
        %v288 = vmul.f32 %v283, %v283
        %289 = vadd.xlane.f32.xlu0 %v285
        %v290 = vpop.xlane.xlu0 %289
        %291 = vadd.xlane.f32.xlu0 %v286
        %v292 = vpop.xlane.xlu0 %291
        %293 = vadd.xlane.f32.xlu0 %v287
        %v294 = vpop.xlane.xlu0 %293
        %295 = vadd.xlane.f32.xlu0 %v288
        %v296 = vpop.xlane.xlu0 %295
        %v297 = vrcp.pop 128.0
        %v298 = vmul.f32 %v290, %v297
        %v299 = vmul.f32 %v292, %v297
        %v300 = vmul.f32 %v294, %v297
        %v301 = vmul.f32 %v296, %v297
        %v302 = vadd.f32 %v298, 1e-05
        %v303 = vadd.f32 %v299, 1e-05
        %v304 = vadd.f32 %v300, 1e-05
        %v305 = vadd.f32 %v301, 1e-05
        %v306 = vrsqrt.pop %v302
        %v307 = vrsqrt.pop %v303
        %v308 = vrsqrt.pop %v304
        %v309 = vrsqrt.pop %v305
        %v310 = vmul.f32 %v280, %v306
        %v311 = vmul.f32 %v281, %v307
        %v312 = vmul.f32 %v282, %v308
        %v313 = vmul.f32 %v283, %v309
        %v315 = vlaneseq
        %v316 = vshrl.u32 %v315, 7
        %v317 = vsub.s32 0, %v316
        %v318 = vrot.slane %v284, %v317
        %v320 = vmul.f32 %v310, %v318
        %v321 = vmul.f32 %v311, %v318
        %v322 = vmul.f32 %v312, %v318
        %v323 = vmul.f32 %v313, %v318
        %v324 = vld [vmem:[#allocation5] sm:$0xff]
        %v325 = vld [vmem:[#allocation5 + $0x8] sm:$0xff]
        %v326 = vld [vmem:[#allocation5 + $0x10] sm:$0xff]
        %v327 = vld [vmem:[#allocation5 + $0x18] sm:$0xff]
        %v328 = vld [vmem:[#allocation5 + $0x20] sm:$0xff]
        %v329 = vld [vmem:[#allocation5 + $0x28] sm:$0xff]
        %v330 = vld [vmem:[#allocation5 + $0x30] sm:$0xff]
        %v331 = vld [vmem:[#allocation5 + $0x38] sm:$0xff]
        %v332 = vld [vmem:[#allocation5 + $0x40] sm:$0xff]
        %v333 = vld [vmem:[#allocation5 + $0x48] sm:$0xff]
        %v334 = vld [vmem:[#allocation5 + $0x50] sm:$0xff]
        %v335 = vld [vmem:[#allocation5 + $0x58] sm:$0xff]
        %v336 = vld [vmem:[#allocation5 + $0x60] sm:$0xff]
        %v337 = vld [vmem:[#allocation5 + $0x68] sm:$0xff]
        %v338 = vld [vmem:[#allocation5 + $0x70] sm:$0xff]
        %v339 = vld [vmem:[#allocation5 + $0x78] sm:$0xff]
        %v340 = vld [vmem:[#allocation5 + $0x80] sm:$0xff]
        %v341 = vld [vmem:[#allocation5 + $0x88] sm:$0xff]
        %v342 = vld [vmem:[#allocation5 + $0x90] sm:$0xff]
        %v343 = vld [vmem:[#allocation5 + $0x98] sm:$0xff]
        %v344 = vld [vmem:[#allocation5 + $0xa0] sm:$0xff]
        %v345 = vld [vmem:[#allocation5 + $0xa8] sm:$0xff]
        %v346 = vld [vmem:[#allocation5 + $0xb0] sm:$0xff]
        %v347 = vld [vmem:[#allocation5 + $0xb8] sm:$0xff]
        %v348 = vld [vmem:[#allocation5 + $0xc0] sm:$0xff]
        %v349 = vld [vmem:[#allocation5 + $0xc8] sm:$0xff]
        %v350 = vld [vmem:[#allocation5 + $0xd0] sm:$0xff]
        %v351 = vld [vmem:[#allocation5 + $0xd8] sm:$0xff]
        %v352 = vld [vmem:[#allocation5 + $0xe0] sm:$0xff]
        %v353 = vld [vmem:[#allocation5 + $0xe8] sm:$0xff]
        %v354 = vld [vmem:[#allocation5 + $0xf0] sm:$0xff]
        %v355 = vld [vmem:[#allocation5 + $0xf8] sm:$0xff]
        %v356 = vld [vmem:[#allocation5 + $0x100] sm:$0xff]
        %v357 = vld [vmem:[#allocation5 + $0x108] sm:$0xff]
        %v358 = vld [vmem:[#allocation5 + $0x110] sm:$0xff]
        %v359 = vld [vmem:[#allocation5 + $0x118] sm:$0xff]
        %v360 = vld [vmem:[#allocation5 + $0x120] sm:$0xff]
        %v361 = vld [vmem:[#allocation5 + $0x128] sm:$0xff]
        %v362 = vld [vmem:[#allocation5 + $0x130] sm:$0xff]
        %v363 = vld [vmem:[#allocation5 + $0x138] sm:$0xff]
        %v364 = vld [vmem:[#allocation5 + $0x140] sm:$0xff]
        %v365 = vld [vmem:[#allocation5 + $0x148] sm:$0xff]
        %v366 = vld [vmem:[#allocation5 + $0x150] sm:$0xff]
        %v367 = vld [vmem:[#allocation5 + $0x158] sm:$0xff]
        %v368 = vld [vmem:[#allocation5 + $0x160] sm:$0xff]
        %v369 = vld [vmem:[#allocation5 + $0x168] sm:$0xff]
        %v370 = vld [vmem:[#allocation5 + $0x170] sm:$0xff]
        %v371 = vld [vmem:[#allocation5 + $0x178] sm:$0xff]
        %372 = vmatprep.subr.mxu0 %v370
        %373 = vmatpush1.msra.mxu0 %v369
        %374 = vmatprep.subr.mxu0 %v367
        %375 = vmatpush1.msra.mxu0 %v366
        %376 = vmatprep.subr.mxu0 %v364
        %377 = vmatpush1.msra.mxu0 %v363
        %378 = vmatprep.subr.mxu0 %v361
        %379 = vmatpush1.msra.mxu0 %v360
        %380 = vmatprep.subr.mxu0 %v358
        %381 = vmatpush1.msra.mxu0 %v357
        %382 = vmatprep.subr.mxu0 %v355
        %383 = vmatpush1.msra.mxu0 %v354
        %384 = vmatprep.subr.mxu0 %v352
        %385 = vmatpush1.msra.mxu0 %v351
        %386 = vmatprep.subr.mxu0 %v349
        %387 = vmatpush1.msra.mxu0 %v348
        %388 = vmatprep.subr.mxu0 %v346
        %389 = vmatpush1.msra.mxu0 %v345
        %390 = vmatprep.subr.mxu0 %v343
        %391 = vmatpush1.msra.mxu0 %v342
        %392 = vmatprep.subr.mxu0 %v340
        %393 = vmatpush1.msra.mxu0 %v339
        %394 = vmatprep.subr.mxu0 %v337
        %395 = vmatpush1.msra.mxu0 %v336
        %396 = vmatprep.subr.mxu0 %v334
        %397 = vmatpush1.msra.mxu0 %v333
        %398 = vmatprep.subr.mxu0 %v331
        %399 = vmatpush1.msra.mxu0 %v330
        %400 = vmatprep.subr.mxu0 %v328
        %401 = vmatpush1.msra.mxu0 %v327
        %402 = vmatprep.subr.mxu0 %v325
        %403 = vmatpush1.msra.mxu0 %v324
        %404 = vmatprep.subr.mxu0 0.0
        %405 = vmatpush2.msra.mxu0 0.0
        %406 = vmatprep.subr.mxu0 0.0
        %407 = vmatpush2.msra.mxu0 0.0
        %408 = vmatprep.subr.mxu0 0.0
        %409 = vmatpush2.msra.mxu0 0.0
        %410 = vmatprep.subr.mxu0 0.0
        %411 = vmatpush2.msra.mxu0 0.0
        %412 = vmatprep.subr.mxu0 0.0
        %413 = vmatpush2.msra.mxu0 0.0
        %414 = vmatprep.subr.mxu0 0.0
        %415 = vmatpush2.msra.mxu0 0.0
        %416 = vmatprep.subr.mxu0 0.0
        %417 = vmatpush2.msra.mxu0 0.0
        %418 = vmatprep.subr.mxu0 0.0
        %419 = vmatpush2.msra.mxu0 0.0
        %420 = vmatprep.subr.mxu0 0.0
        %421 = vmatpush2.msra.mxu0 0.0
        %422 = vmatprep.subr.mxu0 0.0
        %423 = vmatpush2.msra.mxu0 0.0
        %424 = vmatprep.subr.mxu0 0.0
        %425 = vmatpush2.msra.mxu0 0.0
        %426 = vmatprep.subr.mxu0 0.0
        %427 = vmatpush2.msra.mxu0 0.0
        %428 = vmatprep.subr.mxu0 0.0
        %429 = vmatpush2.msra.mxu0 0.0
        %430 = vmatprep.subr.mxu0 0.0
        %431 = vmatpush2.msra.mxu0 0.0
        %432 = vmatprep.subr.mxu0 0.0
        %433 = vmatpush2.msra.mxu0 0.0
        %434 = vmatprep.subr.mxu0 0.0
        %435 = vmatpush2.msra.mxu0 0.0
        %436 = vmatprep.mubr.f32.mxu0 0.0
        %437 = vmatmul.mubr.f32.gmra.mxu0 %v320
        %v438 = vpop.f32.mrf.mxu0
        %v439 = vadd.f32 0.0, %v438
        %v440 = vpop.f32.mrf.mxu0
        %v441 = vadd.f32 0.0, %v440
        %442 = vmatprep.mubr.f32.mxu0 0.0
        %443 = vmatmul.mubr.f32.gmra.mxu0 %v321
        %v444 = vpop.f32.mrf.mxu0
        %v445 = vadd.f32 0.0, %v444
        %v446 = vpop.f32.mrf.mxu0
        %v447 = vadd.f32 0.0, %v446
        %448 = vmatprep.mubr.f32.mxu0 0.0
        %449 = vmatmul.mubr.f32.gmra.mxu0 %v322
        %v450 = vpop.f32.mrf.mxu0
        %v451 = vadd.f32 0.0, %v450
        %v452 = vpop.f32.mrf.mxu0
        %v453 = vadd.f32 0.0, %v452
        %454 = vmatprep.mubr.f32.mxu0 0.0
        %455 = vmatmul.mubr.f32.gmra.mxu0 %v323
        %v456 = vpop.f32.mrf.mxu0
        %v457 = vadd.f32 0.0, %v456
        %v458 = vpop.f32.mrf.mxu0
        %v459 = vadd.f32 0.0, %v458
        %460 = vdwg.mxu0
        %461 = vmatprep.subr.mxu0 0.0
        %462 = vmatpush1.msra.mxu0 %v371
        %463 = vmatprep.subr.mxu0 0.0
        %464 = vmatpush1.msra.mxu0 %v368
        %465 = vmatprep.subr.mxu0 0.0
        %466 = vmatpush1.msra.mxu0 %v365
        %467 = vmatprep.subr.mxu0 0.0
        %468 = vmatpush1.msra.mxu0 %v362
        %469 = vmatprep.subr.mxu0 0.0
        %470 = vmatpush1.msra.mxu0 %v359
        %471 = vmatprep.subr.mxu0 0.0
        %472 = vmatpush1.msra.mxu0 %v356
        %473 = vmatprep.subr.mxu0 0.0
        %474 = vmatpush1.msra.mxu0 %v353
        %475 = vmatprep.subr.mxu0 0.0
        %476 = vmatpush1.msra.mxu0 %v350
        %477 = vmatprep.subr.mxu0 0.0
        %478 = vmatpush1.msra.mxu0 %v347
        %479 = vmatprep.subr.mxu0 0.0
        %480 = vmatpush1.msra.mxu0 %v344
        %481 = vmatprep.subr.mxu0 0.0
        %482 = vmatpush1.msra.mxu0 %v341
        %483 = vmatprep.subr.mxu0 0.0
        %484 = vmatpush1.msra.mxu0 %v338
        %485 = vmatprep.subr.mxu0 0.0
        %486 = vmatpush1.msra.mxu0 %v335
        %487 = vmatprep.subr.mxu0 0.0
        %488 = vmatpush1.msra.mxu0 %v332
        %489 = vmatprep.subr.mxu0 0.0
        %490 = vmatpush1.msra.mxu0 %v329
        %491 = vmatprep.subr.mxu0 0.0
        %492 = vmatpush1.msra.mxu0 %v326
        %493 = vmatprep.subr.mxu0 0.0
        %494 = vmatpush2.msra.mxu0 0.0
        %495 = vmatprep.subr.mxu0 0.0
        %496 = vmatpush2.msra.mxu0 0.0
        %497 = vmatprep.subr.mxu0 0.0
        %498 = vmatpush2.msra.mxu0 0.0
        %499 = vmatprep.subr.mxu0 0.0
        %500 = vmatpush2.msra.mxu0 0.0
        %501 = vmatprep.subr.mxu0 0.0
        %502 = vmatpush2.msra.mxu0 0.0
        %503 = vmatprep.subr.mxu0 0.0
        %504 = vmatpush2.msra.mxu0 0.0
        %505 = vmatprep.subr.mxu0 0.0
        %506 = vmatpush2.msra.mxu0 0.0
        %507 = vmatprep.subr.mxu0 0.0
        %508 = vmatpush2.msra.mxu0 0.0
        %509 = vmatprep.subr.mxu0 0.0
        %510 = vmatpush2.msra.mxu0 0.0
        %511 = vmatprep.subr.mxu0 0.0
        %512 = vmatpush2.msra.mxu0 0.0
        %513 = vmatprep.subr.mxu0 0.0
        %514 = vmatpush2.msra.mxu0 0.0
        %515 = vmatprep.subr.mxu0 0.0
        %516 = vmatpush2.msra.mxu0 0.0
        %517 = vmatprep.subr.mxu0 0.0
        %518 = vmatpush2.msra.mxu0 0.0
        %519 = vmatprep.subr.mxu0 0.0
        %520 = vmatpush2.msra.mxu0 0.0
        %521 = vmatprep.subr.mxu0 0.0
        %522 = vmatpush2.msra.mxu0 0.0
        %523 = vmatprep.subr.mxu0 0.0
        %524 = vmatpush2.msra.mxu0 0.0
        %525 = vmatprep.mubr.f32.mxu0 0.0
        %526 = vmatmul.mubr.f32.gmra.mxu0 %v320
        %v527 = vpop.f32.mrf.mxu0
        %v528 = vadd.f32 0.0, %v527
        %v529 = vpop.f32.mrf.mxu0
        %530 = vmatprep.mubr.f32.mxu0 0.0
        %531 = vmatmul.mubr.f32.gmra.mxu0 %v321
        %v532 = vpop.f32.mrf.mxu0
        %v533 = vadd.f32 0.0, %v532
        %v534 = vpop.f32.mrf.mxu0
        %535 = vmatprep.mubr.f32.mxu0 0.0
        %536 = vmatmul.mubr.f32.gmra.mxu0 %v322
        %v537 = vpop.f32.mrf.mxu0
        %v538 = vadd.f32 0.0, %v537
        %v539 = vpop.f32.mrf.mxu0
        %540 = vmatprep.mubr.f32.mxu0 0.0
        %541 = vmatmul.mubr.f32.gmra.mxu0 %v323
        %v542 = vpop.f32.mrf.mxu0
        %v543 = vadd.f32 0.0, %v542
        %v544 = vpop.f32.mrf.mxu0
        %545 = vdwg.mxu0
        %v546 = vmul.f32 %v439, 0.17677669
        %v547 = vmul.f32 %v445, 0.17677669
        %v548 = vmul.f32 %v451, 0.17677669
        %v549 = vmul.f32 %v457, 0.17677669
        %550 = vst [vmem:[%s261] sm:$0xff] %v546
        %551 = vst [vmem:[%s261 + $0x8] sm:$0xff] %v547
        %552 = vst [vmem:[%s261 + $0x10] sm:$0xff] %v548
        %553 = vst [vmem:[%s261 + $0x18] sm:$0xff] %v549
        %554 = vst [vmem:[%s268] sm:$0xff] %v441
        %555 = vst [vmem:[%s268 + $0x8] sm:$0xff] %v447
        %556 = vst [vmem:[%s268 + $0x10] sm:$0xff] %v453
        %557 = vst [vmem:[%s268 + $0x18] sm:$0xff] %v459
        %558 = vst [vmem:[%s275] sm:$0xff] %v528
        %559 = vst [vmem:[%s275 + $0x8] sm:$0xff] %v533
        %560 = vst [vmem:[%s275 + $0x10] sm:$0xff] %v538
        %561 = vst [vmem:[%s275 + $0x18] sm:$0xff] %v543
        %s562 = sand.u32 %s103, 1
        %s563 = scalar_lea.sflag [#allocation4], %s562
        %s564 = sand.u32 %s103, 1
        %s565 = smul.addr %s564, 32
        %s566 = scalar_lea.vmem [#allocation7], %s565
        %s567 = sand.u32 %s27, 1
        %s568 = scalar_lea.sflag [#allocation9], %s567
        %s569 = sand.u32 %s129, 1
        %s570 = smul.addr %s569, 32
        %s571 = scalar_lea.vmem [#allocation8], %s570
        %s572 = sand.u32 %s27, 1
        %s573 = scalar_lea.sflag [#allocation9], %s572
        %s574 = sand.u32 %s155, 1
        %s575 = smul.addr %s574, 32
        %s576 = scalar_lea.vmem [#allocation10], %s575
        // Predicated region
        $region41: #{tpu_custom_call.1} parent=31 // pred_check
          %p577 = pneg %p113
        $region42: #{tpu_custom_call.1} parent=31 // pred_check_branch
          %579 = sbr.rel (%p577) target = $region44
        $region43: #{tpu_custom_call.1} parent=31 // pred_region
          %s580 = smul.u32 4, %s27
          %s582 = ssub.s32 512, 512
          %583 = vsyncadd %s563, %s582
          %s584 = smul.addr %s580, 128
          %s585 = scalar_lea.hbm %s3, %s584
          %s586 = sshll.u32 %s566, 4
          %s587 = int_to_ptr.vmem [resolvable:$true] %s586
          %592 = dma.vmem_to_hbm [thread:$0]  %s587, 512, %s585, %s563, 128, 128, 8
        $region44: #{tpu_custom_call.1} parent=31 // pred_fallthru
          _
        // Predicated region
        $region45: #{tpu_custom_call.1} parent=31 // pred_check
          %p593 = pneg %p139
        $region46: #{tpu_custom_call.1} parent=31 // pred_check_branch
          %595 = sbr.rel (%p593) target = $region48
        $region47: #{tpu_custom_call.1} parent=31 // pred_region
          %s596 = smul.u32 4, %s27
          %s598 = ssub.s32 512, 512
          %599 = vsyncadd %s568, %s598
          %s600 = smul.addr %s596, 128
          %s601 = scalar_lea.hbm %s4, %s600
          %s602 = sshll.u32 %s571, 4
          %s603 = int_to_ptr.vmem [resolvable:$true] %s602
          %608 = dma.vmem_to_hbm [thread:$0]  %s603, 512, %s601, %s568, 128, 128, 8
        $region48: #{tpu_custom_call.1} parent=31 // pred_fallthru
          _
        // Predicated region
        $region49: #{tpu_custom_call.1} parent=31 // pred_check
          %p609 = pneg %p165
        $region50: #{tpu_custom_call.1} parent=31 // pred_check_branch
          %611 = sbr.rel (%p609) target = $region52
        $region51: #{tpu_custom_call.1} parent=31 // pred_region
          %s612 = smul.u32 4, %s27
          %s614 = ssub.s32 512, 512
          %615 = vsyncadd %s573, %s614
          %s616 = smul.addr %s612, 128
          %s617 = scalar_lea.hbm %s5, %s616
          %s618 = sshll.u32 %s576, 4
          %s619 = int_to_ptr.vmem [resolvable:$true] %s618
          %624 = dma.vmem_to_hbm [thread:$0]  %s619, 512, %s617, %s573, 128, 128, 8
        $region52: #{tpu_custom_call.1} parent=31 // pred_fallthru
          _
      $region32: #{tpu_custom_call.1} parent=5 // pred_fallthru
        _
      %p625 = scmp.le.s32.totalorder 2, %s22
      // Predicated region
      $region53: #{tpu_custom_call.1} parent=5 // pred_check
        %p626 = pneg %p625
      $region54: #{tpu_custom_call.1} parent=5 // pred_check_branch
        %628 = sbr.rel (%p626) target = $region56
      $region55: #{tpu_custom_call.1} parent=5 // pred_region
        %s629 = ssub.s32 %s22, 2
        // Predicated region
        $region57: #{tpu_custom_call.1} parent=55 // pred_check
          %p630 = pneg %p119
        $region58: #{tpu_custom_call.1} parent=55 // pred_check_branch
          %632 = sbr.rel (%p630) target = $region60
        $region59: #{tpu_custom_call.1} parent=55 // pred_region
          %s633 = sand.u32 %s104, 1
          %s634 = scalar_lea.sflag [#allocation4], %s633
          %s635 = sand.u32 %s104, 1
          %s636 = smul.addr %s635, 32
          %s637 = scalar_lea.vmem [#allocation7], %s636
          %638 = dma.done %s634, 512
        $region60: #{tpu_custom_call.1} parent=55 // pred_fallthru
          _
        // Predicated region
        $region61: #{tpu_custom_call.1} parent=55 // pred_check
          %p639 = pneg %p145
        $region62: #{tpu_custom_call.1} parent=55 // pred_check_branch
          %641 = sbr.rel (%p639) target = $region64
        $region63: #{tpu_custom_call.1} parent=55 // pred_region
          %s642 = sand.u32 %s28, 1
          %s643 = scalar_lea.sflag [#allocation9], %s642
          %s644 = sand.u32 %s130, 1
          %s645 = smul.addr %s644, 32
          %s646 = scalar_lea.vmem [#allocation8], %s645
          %647 = dma.done %s643, 512
        $region64: #{tpu_custom_call.1} parent=55 // pred_fallthru
          _
        // Predicated region
        $region65: #{tpu_custom_call.1} parent=55 // pred_check
          %p648 = pneg %p171
        $region66: #{tpu_custom_call.1} parent=55 // pred_check_branch
          %650 = sbr.rel (%p648) target = $region68
        $region67: #{tpu_custom_call.1} parent=55 // pred_region
          %s651 = sand.u32 %s28, 1
          %s652 = scalar_lea.sflag [#allocation9], %s651
          %s653 = sand.u32 %s156, 1
          %s654 = smul.addr %s653, 32
          %s655 = scalar_lea.vmem [#allocation10], %s654
          %656 = dma.done %s652, 512
        $region68: #{tpu_custom_call.1} parent=55 // pred_fallthru
          _
      $region56: #{tpu_custom_call.1} parent=5 // pred_fallthru
        _
    $region6: #{tpu_custom_call.1} parent=1 // loop_footer
      %s26 = sadd.s32 1, %s22
    $region7: #{tpu_custom_call.1} parent=1 // loop_footer_branch
      %21 = sbr.rel target = $region3
    $region8: #{tpu_custom_call.1} parent=1 // loop_exit
      _
    %657 = vsyncpa [#allocation3], 1
    %s658 = scalar_lea.sflag [#allocation3], 1
    %659 = vsyncpa %s658, 1
    %660 = vsyncpa [#allocation6], 1
    %661 = vsyncpa [#allocation4], 1
    %s662 = scalar_lea.sflag [#allocation4], 1
    %663 = vsyncpa %s662, 1
    %664 = vsyncpa [#allocation9], 1
    %s665 = scalar_lea.sflag [#allocation9], 1
    %666 = vsyncpa %s665, 1

// kernel: tpu_custom_call.1
$region0: #{tpu_custom_call.1}
  #allocation0 [shape = 'u32[]', space=smem, size = 0x4, offset = 0x4, fixed_abs, tag = 'smem constant byte address 0x4 - core index']
  #allocation1 [shape = 'u32[144,128]{1,0:T(1,128)}', space=vmem, size = 0x12000, scoped, tag = 'internal scratch']
  %s0 = inlined_call_operand.hbm [shape: f32[64,128], index: 0, kind: input, shape index: {}]
  %s1 = inlined_call_operand.vmem [shape: f32[1,128], index: 1, kind: input, shape index: {}]
  %s2 = inlined_call_operand.hbm [shape: f32[128,384], index: 2, kind: input, shape index: {}]
  %s3 = inlined_call_operand.hbm [shape: f32[64,128], index: 3, kind: output, shape index: {0}]
  %s4 = inlined_call_operand.hbm [shape: f32[64,128], index: 4, kind: output, shape index: {1}]
  %s5 = inlined_call_operand.hbm [shape: f32[64,128], index: 5, kind: output, shape index: {2}]
  %6 = xla_tuple %s3, %s4, %s5
  %s7 = sld [smem:[#allocation0]]
  $region69: #{tpu_custom_call.1} parent=0
    _
  %s9 = ssub.s32 1, %s7
  %s10 = scalar_select 0, %s9, %s7
  $region1: #{tpu_custom_call.1} parent=0
    #allocation2 [shape = 'u8[32768]{0}', space=vmem, size = 0x8000, scoped, tag = 'input window, operand 0']
    #allocation3 [shape = 's32[2]{0}', space=sflag, size = 0x8, scoped, tag = 'scoped memory for tpu_custom_call.1']
    #allocation4 [shape = 's32[2]{0}', space=sflag, size = 0x8, scoped, tag = 'scoped memory for tpu_custom_call.1']
    #allocation5 [shape = 'u8[196608]{0}', space=vmem, size = 0x30000, scoped, tag = 'input window, operand 2, single buffered']
    #allocation6 [shape = 's32[1]{0}', space=sflag, size = 0x4, scoped, tag = 'scoped memory for tpu_custom_call.1']
    #allocation7 [shape = 'u8[32768]{0}', space=vmem, size = 0x8000, scoped, tag = 'output window, operand 0']
    #allocation8 [shape = 'u8[32768]{0}', space=vmem, size = 0x8000, scoped, tag = 'output window, operand 1']
    #allocation9 [shape = 's32[2]{0}', space=sflag, size = 0x8, scoped, tag = 'scoped memory for tpu_custom_call.1']
    #allocation10 [shape = 'u8[32768]{0}', space=vmem, size = 0x8000, scoped, tag = 'output window, operand 2']
    %11 = vsyncpa [#allocation3], 0
    %s12 = scalar_lea.sflag [#allocation3], 1
    %13 = vsyncpa %s12, 0
    %14 = vsyncpa [#allocation6], 0
    %15 = vsyncpa [#allocation4], 0
    %s16 = scalar_lea.sflag [#allocation4], 1
    %17 = vsyncpa %s16, 0
    %18 = vsyncpa [#allocation9], 0
    %s19 = scalar_lea.sflag [#allocation9], 1
    %20 = vsyncpa %s19, 0
    loop: start=0, step=1, limit=4
    $region2: #{tpu_custom_call.1} parent=1 // loop_pre_header
      _
    $region3: #{tpu_custom_call.1} parent=1 // loop_header
      %s22 = sphi 0, %s26
      %p23 = scmp.ge.s32.totalorder %s22, 4
      %s32 = sphi 0, %s34
      %s35 = sphi 0, %s32
      %s36 = sphi 0, %s35
      %s52 = sphi 0, %s36
      %s56 = sphi 0, %s56
      %s58 = sphi 0, %s56
      %s59 = sphi 0, %s58
      %s73 = sphi 0, %s59
      %s77 = sphi 0, %s77
      %s79 = sphi 0, %s77
      %s80 = sphi 0, %s79
      %s94 = sphi 0, %s80
      %s100 = sphi 0, %s102
      %s103 = sphi 0, %s100
      %s104 = sphi 0, %s103
      %s120 = sphi 0, %s104
      %s126 = sphi 0, %s128
      %s129 = sphi 0, %s126
      %s130 = sphi 0, %s129
      %s146 = sphi 0, %s130
      %s152 = sphi 0, %s154
      %s155 = sphi 0, %s152
      %s156 = sphi 0, %s155
      %s172 = sphi 0, %s156
    $region4: #{tpu_custom_call.1} parent=1 // loop_header_branch
      %25 = sbr.rel (%p23) target = $region8
    $region5: #{tpu_custom_call.1} parent=1 // loop_body
      %s27 = ssub.s32 %s22, 1
      %s28 = ssub.s32 %s22, 2
      %s29 = sadd.s32 %s22, 1
      %s30 = ssub.s32 %s22, %s29
      %p31 = scmp.eq.s32.totalorder %s30, 0
      %s33 = sadd.s32 %s32, 1
      %s34 = scalar_select %p31, %s32, %s33
      %p37 = pneg %p31
      %p38 = scmp.eq.s32.totalorder %s22, 1
      %p39 = por %p37, %p38
      %p40 = scmp.ne.s32.totalorder %s32, %s35
      %p41 = scmp.eq.s32.totalorder %s22, 0
      %p42 = por %p40, %p41
      %p43 = scmp.ne.s32.totalorder %s32, %s35
      %p44 = scmp.eq.s32.totalorder %s27, 1
      %p45 = por %p43, %p44
      %p46 = scmp.ne.s32.totalorder %s35, %s36
      %p47 = scmp.eq.s32.totalorder %s27, 0
      %p48 = por %p46, %p47
      %p49 = scmp.ne.s32.totalorder %s35, %s36
      %p50 = scmp.eq.s32.totalorder %s28, 1
      %p51 = por %p49, %p50
      %p53 = scmp.ne.s32.totalorder %s36, %s52
      %p54 = scmp.eq.s32.totalorder %s28, 0
      %p55 = por %p53, %p54
      %s57 = sadd.s32 %s56, 1
      %p60 = scmp.eq.s32.totalorder %s22, 1
      %p61 = scmp.ne.s32.totalorder %s56, %s58
      %p62 = scmp.eq.s32.totalorder %s22, 0
      %p63 = por %p61, %p62
      %p64 = scmp.ne.s32.totalorder %s56, %s58
      %p65 = scmp.eq.s32.totalorder %s27, 1
      %p66 = por %p64, %p65
      %p67 = scmp.ne.s32.totalorder %s58, %s59
      %p68 = scmp.eq.s32.totalorder %s27, 0
      %p69 = por %p67, %p68
      %p70 = scmp.ne.s32.totalorder %s58, %s59
      %p71 = scmp.eq.s32.totalorder %s28, 1
      %p72 = por %p70, %p71
      %p74 = scmp.ne.s32.totalorder %s59, %s73
      %p75 = scmp.eq.s32.totalorder %s28, 0
      %p76 = por %p74, %p75
      %s78 = sadd.s32 %s77, 1
      %p81 = scmp.eq.s32.totalorder %s22, 1
      %p82 = scmp.ne.s32.totalorder %s77, %s79
      %p83 = scmp.eq.s32.totalorder %s22, 0
      %p84 = por %p82, %p83
      %p85 = scmp.ne.s32.totalorder %s77, %s79
      %p86 = scmp.eq.s32.totalorder %s27, 1
      %p87 = por %p85, %p86
      %p88 = scmp.ne.s32.totalorder %s79, %s80
      %p89 = scmp.eq.s32.totalorder %s27, 0
      %p90 = por %p88, %p89
      %p91 = scmp.ne.s32.totalorder %s79, %s80
      %p92 = scmp.eq.s32.totalorder %s28, 1
      %p93 = por %p91, %p92
      %p95 = scmp.ne.s32.totalorder %s80, %s94
      %p96 = scmp.eq.s32.totalorder %s28, 0
      %p97 = por %p95, %p96
      %s98 = ssub.s32 %s22, %s29
      %p99 = scmp.eq.s32.totalorder %s98, 0
      %s101 = sadd.s32 %s100, 1
      %s102 = scalar_select %p99, %s100, %s101
      %p105 = pneg %p99
      %p106 = scmp.eq.s32.totalorder %s22, 1
      %p107 = por %p105, %p106
      %p108 = scmp.ne.s32.totalorder %s100, %s103
      %p109 = scmp.eq.s32.totalorder %s22, 0
      %p110 = por %p108, %p109
      %p111 = scmp.ne.s32.totalorder %s100, %s103
      %p112 = scmp.eq.s32.totalorder %s27, 1
      %p113 = por %p111, %p112
      %p114 = scmp.ne.s32.totalorder %s103, %s104
      %p115 = scmp.eq.s32.totalorder %s27, 0
      %p116 = por %p114, %p115
      %p117 = scmp.ne.s32.totalorder %s103, %s104
      %p118 = scmp.eq.s32.totalorder %s28, 1
      %p119 = por %p117, %p118
      %p121 = scmp.ne.s32.totalorder %s104, %s120
      %p122 = scmp.eq.s32.totalorder %s28, 0
      %p123 = por %p121, %p122
      %s124 = ssub.s32 %s22, %s29
      %p125 = scmp.eq.s32.totalorder %s124, 0
      %s127 = sadd.s32 %s126, 1
      %s128 = scalar_select %p125, %s126, %s127
      %p131 = pneg %p125
      %p132 = scmp.eq.s32.totalorder %s22, 1
      %p133 = por %p131, %p132
      %p134 = scmp.ne.s32.totalorder %s126, %s129
      %p135 = scmp.eq.s32.totalorder %s22, 0
      %p136 = por %p134, %p135
      %p137 = scmp.ne.s32.totalorder %s126, %s129
      %p138 = scmp.eq.s32.totalorder %s27, 1
      %p139 = por %p137, %p138
      %p140 = scmp.ne.s32.totalorder %s129, %s130
      %p141 = scmp.eq.s32.totalorder %s27, 0
      %p142 = por %p140, %p141
      %p143 = scmp.ne.s32.totalorder %s129, %s130
      %p144 = scmp.eq.s32.totalorder %s28, 1
      %p145 = por %p143, %p144
      %p147 = scmp.ne.s32.totalorder %s130, %s146
      %p148 = scmp.eq.s32.totalorder %s28, 0
      %p149 = por %p147, %p148
      %s150 = ssub.s32 %s22, %s29
      %p151 = scmp.eq.s32.totalorder %s150, 0
      %s153 = sadd.s32 %s152, 1
      %s154 = scalar_select %p151, %s152, %s153
      %p157 = pneg %p151
      %p158 = scmp.eq.s32.totalorder %s22, 1
      %p159 = por %p157, %p158
      %p160 = scmp.ne.s32.totalorder %s152, %s155
      %p161 = scmp.eq.s32.totalorder %s22, 0
      %p162 = por %p160, %p161
      %p163 = scmp.ne.s32.totalorder %s152, %s155
      %p164 = scmp.eq.s32.totalorder %s27, 1
      %p165 = por %p163, %p164
      %p166 = scmp.ne.s32.totalorder %s155, %s156
      %p167 = scmp.eq.s32.totalorder %s27, 0
      %p168 = por %p166, %p167
      %p169 = scmp.ne.s32.totalorder %s155, %s156
      %p170 = scmp.eq.s32.totalorder %s28, 1
      %p171 = por %p169, %p170
      %p173 = scmp.ne.s32.totalorder %s156, %s172
      %p174 = scmp.eq.s32.totalorder %s28, 0
      %p175 = por %p173, %p174
      %p176 = scmp.le.s32.totalorder 1, %s22
      %p177 = scmp.lt.s32.totalorder %s22, 3
      %p178 = pnand %p176, %p177
      %p179 = pneg %p178
      // Predicated region
      $region9: #{tpu_custom_call.1} parent=5 // pred_check
        _
      $region10: #{tpu_custom_call.1} parent=5 // pred_check_branch
        %181 = sbr.rel (%p178) target = $region12
      $region11: #{tpu_custom_call.1} parent=5 // pred_region
        %s182 = ssub.s32 %s22, 1
        // Predicated region
        $region13: #{tpu_custom_call.1} parent=11 // pred_check
          %p183 = pneg %p69
        $region14: #{tpu_custom_call.1} parent=11 // pred_check_branch
          %185 = sbr.rel (%p183) target = $region16
        $region15: #{tpu_custom_call.1} parent=11 // pred_region
          _
        $region16: #{tpu_custom_call.1} parent=11 // pred_fallthru
          _
        // Predicated region
        $region17: #{tpu_custom_call.1} parent=11 // pred_check
          %p186 = pneg %p90
        $region18: #{tpu_custom_call.1} parent=11 // pred_check_branch
          %188 = sbr.rel (%p186) target = $region20
        $region19: #{tpu_custom_call.1} parent=11 // pred_region
          %s190 = ssub.s32 6144, 6144
          %191 = vsyncadd [#allocation6], %s190
          %s192 = sshll.u32 [#allocation5], 4
          %s193 = int_to_ptr.vmem [resolvable:$true] %s192
          %198 = dma.hbm_to_vmem [thread:$0]  %s2, 6144, %s193, [#allocation6], 384, 384, 24
        $region20: #{tpu_custom_call.1} parent=11 // pred_fallthru
          _
      $region12: #{tpu_custom_call.1} parent=5 // pred_fallthru
        _
      %p199 = scmp.lt.s32.totalorder %s22, 2
      // Predicated region
      $region21: #{tpu_custom_call.1} parent=5 // pred_check
        %p200 = pneg %p199
      $region22: #{tpu_custom_call.1} parent=5 // pred_check_branch
        %202 = sbr.rel (%p200) target = $region24
      $region23: #{tpu_custom_call.1} parent=5 // pred_region
        // Predicated region
        $region25: #{tpu_custom_call.1} parent=23 // pred_check
          %p203 = pneg %p42
        $region26: #{tpu_custom_call.1} parent=23 // pred_check_branch
          %205 = sbr.rel (%p203) target = $region28
        $region27: #{tpu_custom_call.1} parent=23 // pred_region
          %s206 = sand.u32 %s32, 1
          %s207 = scalar_lea.sflag [#allocation3], %s206
          %s208 = sand.u32 %s32, 1
          %s209 = smul.addr %s208, 32
          %s210 = scalar_lea.vmem [#allocation2], %s209
          %s211 = smul.u32 4, %s22
          %s213 = ssub.s32 512, 512
          %214 = vsyncadd %s207, %s213
          %s215 = smul.addr %s211, 128
          %s216 = scalar_lea.hbm %s0, %s215
          %s217 = sshll.u32 %s210, 4
          %s218 = int_to_ptr.vmem [resolvable:$true] %s217
          %223 = dma.hbm_to_vmem [thread:$0]  %s216, 512, %s218, %s207, 128, 128, 8
        $region28: #{tpu_custom_call.1} parent=23 // pred_fallthru
          _
      $region24: #{tpu_custom_call.1} parent=5 // pred_fallthru
        _
      %p224 = scmp.le.s32.totalorder 1, %s22
      %p225 = scmp.lt.s32.totalorder %s22, 3
      %p226 = pnand %p224, %p225
      %p227 = pneg %p226
      // Predicated region
      $region29: #{tpu_custom_call.1} parent=5 // pred_check
        _
      $region30: #{tpu_custom_call.1} parent=5 // pred_check_branch
        %229 = sbr.rel (%p226) target = $region32
      $region31: #{tpu_custom_call.1} parent=5 // pred_region
        %s230 = ssub.s32 %s22, 1
        %s231 = sand.u32 %s35, 1
        %s232 = scalar_lea.sflag [#allocation3], %s231
        %s233 = sand.u32 %s35, 1
        %s234 = smul.addr %s233, 32
        %s235 = scalar_lea.vmem [#allocation2], %s234
        // Predicated region
        $region33: #{tpu_custom_call.1} parent=31 // pred_check
          %p236 = pneg %p48
        $region34: #{tpu_custom_call.1} parent=31 // pred_check_branch
          %238 = sbr.rel (%p236) target = $region36
        $region35: #{tpu_custom_call.1} parent=31 // pred_region
          %239 = dma.done %s232, 512
        $region36: #{tpu_custom_call.1} parent=31 // pred_fallthru
          _
        // Predicated region
        $region37: #{tpu_custom_call.1} parent=31 // pred_check
          %p240 = pneg %p90
        $region38: #{tpu_custom_call.1} parent=31 // pred_check_branch
          %242 = sbr.rel (%p240) target = $region40
        $region39: #{tpu_custom_call.1} parent=31 // pred_region
          %243 = dma.done [#allocation6], 6144
        $region40: #{tpu_custom_call.1} parent=31 // pred_fallthru
          _
        %s244 = sand.u32 %s35, 1
        %s245 = scalar_lea.sflag [#allocation3], %s244
        %s246 = sand.u32 %s35, 1
        %s247 = smul.addr %s246, 32
        %s248 = scalar_lea.vmem [#allocation2], %s247
        %p249 = pneg %p48
        %p250 = pneg %p45
        %p251 = pneg %p69
        %p252 = pneg %p66
        %p253 = pneg %p90
        %p254 = pneg %p87
        %p255 = pneg %p116
        %p256 = pneg %p113
        %s257 = sand.u32 %s103, 1
        %s258 = scalar_lea.sflag [#allocation4], %s257
        %s259 = sand.u32 %s103, 1
        %s260 = smul.addr %s259, 32
        %s261 = scalar_lea.vmem [#allocation7], %s260
        %p262 = pneg %p142
        %p263 = pneg %p139
        %s264 = sand.u32 %s27, 1
        %s265 = scalar_lea.sflag [#allocation9], %s264
        %s266 = sand.u32 %s129, 1
        %s267 = smul.addr %s266, 32
        %s268 = scalar_lea.vmem [#allocation8], %s267
        %p269 = pneg %p168
        %p270 = pneg %p165
        %s271 = sand.u32 %s27, 1
        %s272 = scalar_lea.sflag [#allocation9], %s271
        %s273 = sand.u32 %s155, 1
        %s274 = smul.addr %s273, 32
        %s275 = scalar_lea.vmem [#allocation10], %s274
        %s276 = smul.u32 4, %s27
        %s277 = smul.u32 4, %s27
        %s278 = smul.u32 4, %s27
        %s279 = smul.u32 4, %s27
        %v280 = vld [vmem:[%s235] sm:$0xff]
        %v281 = vld [vmem:[%s235 + $0x8] sm:$0xff]
        %v282 = vld [vmem:[%s235 + $0x10] sm:$0xff]
        %v283 = vld [vmem:[%s235 + $0x18] sm:$0xff]
        %v284 = vld [vmem:[%s1] sm:$0x1]
        %v285 = vmul.f32 %v280, %v280
        %v286 = vmul.f32 %v281, %v281
        %v287 = vmul.f32 %v282, %v282
        %v288 = vmul.f32 %v283, %v283
        %289 = vadd.xlane.f32.xlu0 %v285
        %v290 = vpop.xlane.xlu0 %289
        %291 = vadd.xlane.f32.xlu0 %v286
        %v292 = vpop.xlane.xlu0 %291
        %293 = vadd.xlane.f32.xlu0 %v287
        %v294 = vpop.xlane.xlu0 %293
        %295 = vadd.xlane.f32.xlu0 %v288
        %v296 = vpop.xlane.xlu0 %295
        %v297 = vrcp.pop 128.0
        %v298 = vmul.f32 %v290, %v297
        %v299 = vmul.f32 %v292, %v297
        %v300 = vmul.f32 %v294, %v297
        %v301 = vmul.f32 %v296, %v297
        %v302 = vadd.f32 %v298, 1e-05
        %v303 = vadd.f32 %v299, 1e-05
        %v304 = vadd.f32 %v300, 1e-05
        %v305 = vadd.f32 %v301, 1e-05
        %v306 = vrsqrt.pop %v302
        %v307 = vrsqrt.pop %v303
        %v308 = vrsqrt.pop %v304
        %v309 = vrsqrt.pop %v305
        %v310 = vmul.f32 %v280, %v306
        %v311 = vmul.f32 %v281, %v307
        %v312 = vmul.f32 %v282, %v308
        %v313 = vmul.f32 %v283, %v309
        %v315 = vlaneseq
        %v316 = vshrl.u32 %v315, 7
        %v317 = vsub.s32 0, %v316
        %v318 = vrot.slane %v284, %v317
        %v320 = vmul.f32 %v310, %v318
        %v321 = vmul.f32 %v311, %v318
        %v322 = vmul.f32 %v312, %v318
        %v323 = vmul.f32 %v313, %v318
        %v324 = vld [vmem:[#allocation5] sm:$0xff]
        %v325 = vld [vmem:[#allocation5 + $0x8] sm:$0xff]
        %v326 = vld [vmem:[#allocation5 + $0x10] sm:$0xff]
        %v327 = vld [vmem:[#allocation5 + $0x18] sm:$0xff]
        %v328 = vld [vmem:[#allocation5 + $0x20] sm:$0xff]
        %v329 = vld [vmem:[#allocation5 + $0x28] sm:$0xff]
        %v330 = vld [vmem:[#allocation5 + $0x30] sm:$0xff]
        %v331 = vld [vmem:[#allocation5 + $0x38] sm:$0xff]
        %v332 = vld [vmem:[#allocation5 + $0x40] sm:$0xff]
        %v333 = vld [vmem:[#allocation5 + $0x48] sm:$0xff]
        %v334 = vld [vmem:[#allocation5 + $0x50] sm:$0xff]
        %v335 = vld [vmem:[#allocation5 + $0x58] sm:$0xff]
        %v336 = vld [vmem:[#allocation5 + $0x60] sm:$0xff]
        %v337 = vld [vmem:[#allocation5 + $0x68] sm:$0xff]
        %v338 = vld [vmem:[#allocation5 + $0x70] sm:$0xff]
        %v339 = vld [vmem:[#allocation5 + $0x78] sm:$0xff]
        %v340 = vld [vmem:[#allocation5 + $0x80] sm:$0xff]
        %v341 = vld [vmem:[#allocation5 + $0x88] sm:$0xff]
        %v342 = vld [vmem:[#allocation5 + $0x90] sm:$0xff]
        %v343 = vld [vmem:[#allocation5 + $0x98] sm:$0xff]
        %v344 = vld [vmem:[#allocation5 + $0xa0] sm:$0xff]
        %v345 = vld [vmem:[#allocation5 + $0xa8] sm:$0xff]
        %v346 = vld [vmem:[#allocation5 + $0xb0] sm:$0xff]
        %v347 = vld [vmem:[#allocation5 + $0xb8] sm:$0xff]
        %v348 = vld [vmem:[#allocation5 + $0xc0] sm:$0xff]
        %v349 = vld [vmem:[#allocation5 + $0xc8] sm:$0xff]
        %v350 = vld [vmem:[#allocation5 + $0xd0] sm:$0xff]
        %v351 = vld [vmem:[#allocation5 + $0xd8] sm:$0xff]
        %v352 = vld [vmem:[#allocation5 + $0xe0] sm:$0xff]
        %v353 = vld [vmem:[#allocation5 + $0xe8] sm:$0xff]
        %v354 = vld [vmem:[#allocation5 + $0xf0] sm:$0xff]
        %v355 = vld [vmem:[#allocation5 + $0xf8] sm:$0xff]
        %v356 = vld [vmem:[#allocation5 + $0x100] sm:$0xff]
        %v357 = vld [vmem:[#allocation5 + $0x108] sm:$0xff]
        %v358 = vld [vmem:[#allocation5 + $0x110] sm:$0xff]
        %v359 = vld [vmem:[#allocation5 + $0x118] sm:$0xff]
        %v360 = vld [vmem:[#allocation5 + $0x120] sm:$0xff]
        %v361 = vld [vmem:[#allocation5 + $0x128] sm:$0xff]
        %v362 = vld [vmem:[#allocation5 + $0x130] sm:$0xff]
        %v363 = vld [vmem:[#allocation5 + $0x138] sm:$0xff]
        %v364 = vld [vmem:[#allocation5 + $0x140] sm:$0xff]
        %v365 = vld [vmem:[#allocation5 + $0x148] sm:$0xff]
        %v366 = vld [vmem:[#allocation5 + $0x150] sm:$0xff]
        %v367 = vld [vmem:[#allocation5 + $0x158] sm:$0xff]
        %v368 = vld [vmem:[#allocation5 + $0x160] sm:$0xff]
        %v369 = vld [vmem:[#allocation5 + $0x168] sm:$0xff]
        %v370 = vld [vmem:[#allocation5 + $0x170] sm:$0xff]
        %v371 = vld [vmem:[#allocation5 + $0x178] sm:$0xff]
        %372 = vmatprep.subr.mxu0 %v370
        %373 = vmatpush1.msra.mxu0 %v369
        %374 = vmatprep.subr.mxu0 %v367
        %375 = vmatpush1.msra.mxu0 %v366
        %376 = vmatprep.subr.mxu0 %v364
        %377 = vmatpush1.msra.mxu0 %v363
        %378 = vmatprep.subr.mxu0 %v361
        %379 = vmatpush1.msra.mxu0 %v360
        %380 = vmatprep.subr.mxu0 %v358
        %381 = vmatpush1.msra.mxu0 %v357
        %382 = vmatprep.subr.mxu0 %v355
        %383 = vmatpush1.msra.mxu0 %v354
        %384 = vmatprep.subr.mxu0 %v352
        %385 = vmatpush1.msra.mxu0 %v351
        %386 = vmatprep.subr.mxu0 %v349
        %387 = vmatpush1.msra.mxu0 %v348
        %388 = vmatprep.subr.mxu0 %v346
        %389 = vmatpush1.msra.mxu0 %v345
        %390 = vmatprep.subr.mxu0 %v343
        %391 = vmatpush1.msra.mxu0 %v342
        %392 = vmatprep.subr.mxu0 %v340
        %393 = vmatpush1.msra.mxu0 %v339
        %394 = vmatprep.subr.mxu0 %v337
        %395 = vmatpush1.msra.mxu0 %v336
        %396 = vmatprep.subr.mxu0 %v334
        %397 = vmatpush1.msra.mxu0 %v333
        %398 = vmatprep.subr.mxu0 %v331
        %399 = vmatpush1.msra.mxu0 %v330
        %400 = vmatprep.subr.mxu0 %v328
        %401 = vmatpush1.msra.mxu0 %v327
        %402 = vmatprep.subr.mxu0 %v325
        %403 = vmatpush1.msra.mxu0 %v324
        %404 = vmatprep.subr.mxu0 0.0
        %405 = vmatpush2.msra.mxu0 0.0
        %406 = vmatprep.subr.mxu0 0.0
        %407 = vmatpush2.msra.mxu0 0.0
        %408 = vmatprep.subr.mxu0 0.0
        %409 = vmatpush2.msra.mxu0 0.0
        %410 = vmatprep.subr.mxu0 0.0
        %411 = vmatpush2.msra.mxu0 0.0
        %412 = vmatprep.subr.mxu0 0.0
        %413 = vmatpush2.msra.mxu0 0.0
        %414 = vmatprep.subr.mxu0 0.0
        %415 = vmatpush2.msra.mxu0 0.0
        %416 = vmatprep.subr.mxu0 0.0
        %417 = vmatpush2.msra.mxu0 0.0
        %418 = vmatprep.subr.mxu0 0.0
        %419 = vmatpush2.msra.mxu0 0.0
        %420 = vmatprep.subr.mxu0 0.0
        %421 = vmatpush2.msra.mxu0 0.0
        %422 = vmatprep.subr.mxu0 0.0
        %423 = vmatpush2.msra.mxu0 0.0
        %424 = vmatprep.subr.mxu0 0.0
        %425 = vmatpush2.msra.mxu0 0.0
        %426 = vmatprep.subr.mxu0 0.0
        %427 = vmatpush2.msra.mxu0 0.0
        %428 = vmatprep.subr.mxu0 0.0
        %429 = vmatpush2.msra.mxu0 0.0
        %430 = vmatprep.subr.mxu0 0.0
        %431 = vmatpush2.msra.mxu0 0.0
        %432 = vmatprep.subr.mxu0 0.0
        %433 = vmatpush2.msra.mxu0 0.0
        %434 = vmatprep.subr.mxu0 0.0
        %435 = vmatpush2.msra.mxu0 0.0
        %436 = vmatprep.mubr.f32.mxu0 0.0
        %437 = vmatmul.mubr.f32.gmra.mxu0 %v320
        %v438 = vpop.f32.mrf.mxu0
        %v439 = vadd.f32 0.0, %v438
        %v440 = vpop.f32.mrf.mxu0
        %v441 = vadd.f32 0.0, %v440
        %442 = vmatprep.mubr.f32.mxu0 0.0
        %443 = vmatmul.mubr.f32.gmra.mxu0 %v321
        %v444 = vpop.f32.mrf.mxu0
        %v445 = vadd.f32 0.0, %v444
        %v446 = vpop.f32.mrf.mxu0
        %v447 = vadd.f32 0.0, %v446
        %448 = vmatprep.mubr.f32.mxu0 0.0
        %449 = vmatmul.mubr.f32.gmra.mxu0 %v322
        %v450 = vpop.f32.mrf.mxu0
        %v451 = vadd.f32 0.0, %v450
        %v452 = vpop.f32.mrf.mxu0
        %v453 = vadd.f32 0.0, %v452
        %454 = vmatprep.mubr.f32.mxu0 0.0
        %455 = vmatmul.mubr.f32.gmra.mxu0 %v323
        %v456 = vpop.f32.mrf.mxu0
        %v457 = vadd.f32 0.0, %v456
        %v458 = vpop.f32.mrf.mxu0
        %v459 = vadd.f32 0.0, %v458
        %460 = vdwg.mxu0
        %461 = vmatprep.subr.mxu0 0.0
        %462 = vmatpush1.msra.mxu0 %v371
        %463 = vmatprep.subr.mxu0 0.0
        %464 = vmatpush1.msra.mxu0 %v368
        %465 = vmatprep.subr.mxu0 0.0
        %466 = vmatpush1.msra.mxu0 %v365
        %467 = vmatprep.subr.mxu0 0.0
        %468 = vmatpush1.msra.mxu0 %v362
        %469 = vmatprep.subr.mxu0 0.0
        %470 = vmatpush1.msra.mxu0 %v359
        %471 = vmatprep.subr.mxu0 0.0
        %472 = vmatpush1.msra.mxu0 %v356
        %473 = vmatprep.subr.mxu0 0.0
        %474 = vmatpush1.msra.mxu0 %v353
        %475 = vmatprep.subr.mxu0 0.0
        %476 = vmatpush1.msra.mxu0 %v350
        %477 = vmatprep.subr.mxu0 0.0
        %478 = vmatpush1.msra.mxu0 %v347
        %479 = vmatprep.subr.mxu0 0.0
        %480 = vmatpush1.msra.mxu0 %v344
        %481 = vmatprep.subr.mxu0 0.0
        %482 = vmatpush1.msra.mxu0 %v341
        %483 = vmatprep.subr.mxu0 0.0
        %484 = vmatpush1.msra.mxu0 %v338
        %485 = vmatprep.subr.mxu0 0.0
        %486 = vmatpush1.msra.mxu0 %v335
        %487 = vmatprep.subr.mxu0 0.0
        %488 = vmatpush1.msra.mxu0 %v332
        %489 = vmatprep.subr.mxu0 0.0
        %490 = vmatpush1.msra.mxu0 %v329
        %491 = vmatprep.subr.mxu0 0.0
        %492 = vmatpush1.msra.mxu0 %v326
        %493 = vmatprep.subr.mxu0 0.0
        %494 = vmatpush2.msra.mxu0 0.0
        %495 = vmatprep.subr.mxu0 0.0
        %496 = vmatpush2.msra.mxu0 0.0
        %497 = vmatprep.subr.mxu0 0.0
        %498 = vmatpush2.msra.mxu0 0.0
        %499 = vmatprep.subr.mxu0 0.0
        %500 = vmatpush2.msra.mxu0 0.0
        %501 = vmatprep.subr.mxu0 0.0
        %502 = vmatpush2.msra.mxu0 0.0
        %503 = vmatprep.subr.mxu0 0.0
        %504 = vmatpush2.msra.mxu0 0.0
        %505 = vmatprep.subr.mxu0 0.0
        %506 = vmatpush2.msra.mxu0 0.0
        %507 = vmatprep.subr.mxu0 0.0
        %508 = vmatpush2.msra.mxu0 0.0
        %509 = vmatprep.subr.mxu0 0.0
        %510 = vmatpush2.msra.mxu0 0.0
        %511 = vmatprep.subr.mxu0 0.0
        %512 = vmatpush2.msra.mxu0 0.0
        %513 = vmatprep.subr.mxu0 0.0
        %514 = vmatpush2.msra.mxu0 0.0
        %515 = vmatprep.subr.mxu0 0.0
        %516 = vmatpush2.msra.mxu0 0.0
        %517 = vmatprep.subr.mxu0 0.0
        %518 = vmatpush2.msra.mxu0 0.0
        %519 = vmatprep.subr.mxu0 0.0
        %520 = vmatpush2.msra.mxu0 0.0
        %521 = vmatprep.subr.mxu0 0.0
        %522 = vmatpush2.msra.mxu0 0.0
        %523 = vmatprep.subr.mxu0 0.0
        %524 = vmatpush2.msra.mxu0 0.0
        %525 = vmatprep.mubr.f32.mxu0 0.0
        %526 = vmatmul.mubr.f32.gmra.mxu0 %v320
        %v527 = vpop.f32.mrf.mxu0
        %v528 = vadd.f32 0.0, %v527
        %v529 = vpop.f32.mrf.mxu0
        %530 = vmatprep.mubr.f32.mxu0 0.0
        %531 = vmatmul.mubr.f32.gmra.mxu0 %v321
        %v532 = vpop.f32.mrf.mxu0
        %v533 = vadd.f32 0.0, %v532
        %v534 = vpop.f32.mrf.mxu0
        %535 = vmatprep.mubr.f32.mxu0 0.0
        %536 = vmatmul.mubr.f32.gmra.mxu0 %v322
        %v537 = vpop.f32.mrf.mxu0
        %v538 = vadd.f32 0.0, %v537
        %v539 = vpop.f32.mrf.mxu0
        %540 = vmatprep.mubr.f32.mxu0 0.0
        %541 = vmatmul.mubr.f32.gmra.mxu0 %v323
        %v542 = vpop.f32.mrf.mxu0
        %v543 = vadd.f32 0.0, %v542
        %v544 = vpop.f32.mrf.mxu0
        %545 = vdwg.mxu0
        %v546 = vmul.f32 %v439, 0.17677669
        %v547 = vmul.f32 %v445, 0.17677669
        %v548 = vmul.f32 %v451, 0.17677669
        %v549 = vmul.f32 %v457, 0.17677669
        %550 = vst [vmem:[%s261] sm:$0xff] %v546
        %551 = vst [vmem:[%s261 + $0x8] sm:$0xff] %v547
        %552 = vst [vmem:[%s261 + $0x10] sm:$0xff] %v548
        %553 = vst [vmem:[%s261 + $0x18] sm:$0xff] %v549
        %554 = vst [vmem:[%s268] sm:$0xff] %v441
        %555 = vst [vmem:[%s268 + $0x8] sm:$0xff] %v447
        %556 = vst [vmem:[%s268 + $0x10] sm:$0xff] %v453
        %557 = vst [vmem:[%s268 + $0x18] sm:$0xff] %v459
        %558 = vst [vmem:[%s275] sm:$0xff] %v528
        %559 = vst [vmem:[%s275 + $0x8] sm:$0xff] %v533
        %560 = vst [vmem:[%s275 + $0x10] sm:$0xff] %v538
        %561 = vst [vmem:[%s275 + $0x18] sm:$0xff] %v543
        %s562 = sand.u32 %s103, 1
        %s563 = scalar_lea.sflag [#allocation4], %s562
        %s564 = sand.u32 %s103, 1
        %s565 = smul.addr %s564, 32
        %s566 = scalar_lea.vmem [#allocation7], %s565
        %s567 = sand.u32 %s27, 1
        %s568 = scalar_lea.sflag [#allocation9], %s567
        %s569 = sand.u32 %s129, 1
        %s570 = smul.addr %s569, 32
        %s571 = scalar_lea.vmem [#allocation8], %s570
        %s572 = sand.u32 %s27, 1
        %s573 = scalar_lea.sflag [#allocation9], %s572
        %s574 = sand.u32 %s155, 1
        %s575 = smul.addr %s574, 32
        %s576 = scalar_lea.vmem [#allocation10], %s575
        // Predicated region
        $region41: #{tpu_custom_call.1} parent=31 // pred_check
          %p577 = pneg %p113
        $region42: #{tpu_custom_call.1} parent=31 // pred_check_branch
          %579 = sbr.rel (%p577) target = $region44
        $region43: #{tpu_custom_call.1} parent=31 // pred_region
          %s580 = smul.u32 4, %s27
          %s582 = ssub.s32 512, 512
          %583 = vsyncadd %s563, %s582
          %s584 = smul.addr %s580, 128
          %s585 = scalar_lea.hbm %s3, %s584
          %s586 = sshll.u32 %s566, 4
          %s587 = int_to_ptr.vmem [resolvable:$true] %s586
          %592 = dma.vmem_to_hbm [thread:$0]  %s587, 512, %s585, %s563, 128, 128, 8
        $region44: #{tpu_custom_call.1} parent=31 // pred_fallthru
          _
        // Predicated region
        $region45: #{tpu_custom_call.1} parent=31 // pred_check
          %p593 = pneg %p139
        $region46: #{tpu_custom_call.1} parent=31 // pred_check_branch
          %595 = sbr.rel (%p593) target = $region48
        $region47: #{tpu_custom_call.1} parent=31 // pred_region
          %s596 = smul.u32 4, %s27
          %s598 = ssub.s32 512, 512
          %599 = vsyncadd %s568, %s598
          %s600 = smul.addr %s596, 128
          %s601 = scalar_lea.hbm %s4, %s600
          %s602 = sshll.u32 %s571, 4
          %s603 = int_to_ptr.vmem [resolvable:$true] %s602
          %608 = dma.vmem_to_hbm [thread:$0]  %s603, 512, %s601, %s568, 128, 128, 8
        $region48: #{tpu_custom_call.1} parent=31 // pred_fallthru
          _
        // Predicated region
        $region49: #{tpu_custom_call.1} parent=31 // pred_check
          %p609 = pneg %p165
        $region50: #{tpu_custom_call.1} parent=31 // pred_check_branch
          %611 = sbr.rel (%p609) target = $region52
        $region51: #{tpu_custom_call.1} parent=31 // pred_region
          %s612 = smul.u32 4, %s27
          %s614 = ssub.s32 512, 512
          %615 = vsyncadd %s573, %s614
          %s616 = smul.addr %s612, 128
          %s617 = scalar_lea.hbm %s5, %s616
          %s618 = sshll.u32 %s576, 4
          %s619 = int_to_ptr.vmem [resolvable:$true] %s618
          %624 = dma.vmem_to_hbm [thread:$0]  %s619, 512, %s617, %s573, 128, 128, 8
        $region52: #{tpu_custom_call.1} parent=31 // pred_fallthru
          _
      $region32: #{tpu_custom_call.1} parent=5 // pred_fallthru
        _
      %p625 = scmp.le.s32.totalorder 2, %s22
      // Predicated region
      $region53: #{tpu_custom_call.1} parent=5 // pred_check
        %p626 = pneg %p625
      $region54: #{tpu_custom_call.1} parent=5 // pred_check_branch
        %628 = sbr.rel (%p626) target = $region56
      $region55: #{tpu_custom_call.1} parent=5 // pred_region
        %s629 = ssub.s32 %s22, 2
        // Predicated region
        $region57: #{tpu_custom_call.1} parent=55 // pred_check
          %p630 = pneg %p119
        $region58: #{tpu_custom_call.1} parent=55 // pred_check_branch
          %632 = sbr.rel (%p630) target = $region60
        $region59: #{tpu_custom_call.1} parent=55 // pred_region
          %s633 = sand.u32 %s104, 1
          %s634 = scalar_lea.sflag [#allocation4], %s633
          %s635 = sand.u32 %s104, 1
          %s636 = smul.addr %s635, 32
          %s637 = scalar_lea.vmem [#allocation7], %s636
          %638 = dma.done %s634, 512
        $region60: #{tpu_custom_call.1} parent=55 // pred_fallthru
          _
        // Predicated region
        $region61: #{tpu_custom_call.1} parent=55 // pred_check
          %p639 = pneg %p145
        $region62: #{tpu_custom_call.1} parent=55 // pred_check_branch
          %641 = sbr.rel (%p639) target = $region64
        $region63: #{tpu_custom_call.1} parent=55 // pred_region
          %s642 = sand.u32 %s28, 1
          %s643 = scalar_lea.sflag [#allocation9], %s642
          %s644 = sand.u32 %s130, 1
          %s645 = smul.addr %s644, 32
          %s646 = scalar_lea.vmem [#allocation8], %s645
          %647 = dma.done %s643, 512
        $region64: #{tpu_custom_call.1} parent=55 // pred_fallthru
          _
        // Predicated region
        $region65: #{tpu_custom_call.1} parent=55 // pred_check
          %p648 = pneg %p171
        $region66: #{tpu_custom_call.1} parent=55 // pred_check_branch
          %650 = sbr.rel (%p648) target = $region68
        $region67: #{tpu_custom_call.1} parent=55 // pred_region
          %s651 = sand.u32 %s28, 1
          %s652 = scalar_lea.sflag [#allocation9], %s651
          %s653 = sand.u32 %s156, 1
          %s654 = smul.addr %s653, 32
          %s655 = scalar_lea.vmem [#allocation10], %s654
          %656 = dma.done %s652, 512
        $region68: #{tpu_custom_call.1} parent=55 // pred_fallthru
          _
      $region56: #{tpu_custom_call.1} parent=5 // pred_fallthru
        _
    $region6: #{tpu_custom_call.1} parent=1 // loop_footer
      %s26 = sadd.s32 1, %s22
    $region7: #{tpu_custom_call.1} parent=1 // loop_footer_branch
      %21 = sbr.rel target = $region3
    $region8: #{tpu_custom_call.1} parent=1 // loop_exit
      _
    %657 = vsyncpa [#allocation3], 1
    %s658 = scalar_lea.sflag [#allocation3], 1
    %659 = vsyncpa %s658, 1
    %660 = vsyncpa [#allocation6], 1
    %661 = vsyncpa [#allocation4], 1
    %s662 = scalar_lea.sflag [#allocation4], 1
    %663 = vsyncpa %s662, 1
    %664 = vsyncpa [#allocation9], 1
    %s665 = scalar_lea.sflag [#allocation9], 1
    %666 = vsyncpa %s665, 1

</llo_original>
